<compile_context>
chip_gen: v7x
topology: tpu7x:2x2x1
jax: 0.10.0
libtpu: 0.0.40
codegen_flags: <defaults>
</compile_context>

<pallas_src>
import functools

import jax
import jax.numpy as jnp
from jax.experimental import pallas as pl
from jax.experimental.pallas import tpu as pltpu


def _round_up(n, m):
    return (n + m - 1) // m * m


# ---------------------------------------------------------------------------
# Kernels
# ---------------------------------------------------------------------------

def _disc_kernel(x_ref, w1_ref, b1_ref, w2_ref, b2_ref, w3_ref, b3_ref,
                 out_ref, *, use_sigmoid, approx_sigmoid):
    """One batch tile, w1 fully resident: x (TM, F) -> out (1, TM)."""
    x = x_ref[...].astype(w1_ref.dtype)            # in-kernel cast (VPU, hidden under MXU)

    # Linear(F, 512) + LeakyReLU(0.2)   (MXU, f32 accumulation)
    h1 = jnp.dot(x, w1_ref[...], preferred_element_type=jnp.float32) + b1_ref[...]
    h1 = jnp.maximum(h1, 0.2 * h1)

    # Linear(512, 256) + LeakyReLU(0.2)
    h2 = jnp.dot(h1.astype(w2_ref.dtype), w2_ref[...],
                 preferred_element_type=jnp.float32) + b2_ref[...]
    h2 = jnp.maximum(h2, 0.2 * h2)

    # Linear(256, 1): an N=1 matmul wastes the MXU -> VPU multiply + lane
    # reduction instead (w3 is a (1, 256) row, b3 is an SMEM scalar).
    h3 = jnp.sum(h2 * w3_ref[...], axis=-1) + b3_ref[0]        # (TM,)

    if use_sigmoid:
        h3 = pl.reciprocal(1.0 + jnp.exp(-h3), approx=approx_sigmoid)

    # Lane-dense store: one (1, TM) row per tile (no (TM, 1) masked stores).
    out_ref[...] = h3.reshape(1, -1)


def _disc_kernel_ktiled(x_ref, w1_ref, b1_ref, w2_ref, b2_ref, w3_ref, b3_ref,
                        out_ref, acc_ref, *, use_sigmoid, approx_sigmoid):
    """K-tiled variant: grid = (batch tiles, F tiles); layer-1 accumulated in
    a f32 VMEM scratch, layers 2/3 run on the last K step only."""
    k = pl.program_id(1)

    @pl.when(k == 0)
    def _():
        acc_ref[...] = jnp.zeros_like(acc_ref)

    x = x_ref[...].astype(w1_ref.dtype)
    acc_ref[...] += jnp.dot(x, w1_ref[...], preferred_element_type=jnp.float32)

    @pl.when(k == pl.num_programs(1) - 1)
    def _():
        h1 = acc_ref[...] + b1_ref[...]
        h1 = jnp.maximum(h1, 0.2 * h1)
        h2 = jnp.dot(h1.astype(w2_ref.dtype), w2_ref[...],
                     preferred_element_type=jnp.float32) + b2_ref[...]
        h2 = jnp.maximum(h2, 0.2 * h2)
        h3 = jnp.sum(h2 * w3_ref[...], axis=-1) + b3_ref[0]
        if use_sigmoid:
            h3 = pl.reciprocal(1.0 + jnp.exp(-h3), approx=approx_sigmoid)
        out_ref[...] = h3.reshape(1, -1)


# ---------------------------------------------------------------------------
# Tiling / VMEM heuristics
# ---------------------------------------------------------------------------

def _vmem_budget_bytes():
    """~3/4 of physical VMEM; 48 MiB fallback is safe on every chip (v7x=64MiB)."""
    cap = 64 * 1024 * 1024
    try:
        cap = int(pltpu.get_tpu_info().vmem_capacity_bytes)
    except Exception:
        pass
    return (3 * cap) // 4


def _choose_tiles(B, F, budget, w_itemsize):
    """Returns (tm, tk).  tk=None means w1 stays fully resident in VMEM."""
    # --- decide whether w1 (F x 512) can stay resident -----------------------
    w1_bytes = F * 512 * w_itemsize
    tk = None
    if 2 * w1_bytes > budget:   # even double-buffered w1 would eat the budget
        for cand in (4096, 2048, 1024, 512, 256, 128):
            if cand < F and F % cand == 0 and 2 * cand * 512 * w_itemsize <= budget // 4:
                tk = cand
                break
        # TODO(synk): mask/pad the reduction dim so K-tiling also works when no
        # multiple of 128 divides F; until then w1 stays resident (may spill).
    xk = tk if tk is not None else F

    # --- batch tile: biggest multiple of 128 whose working set fits ----------
    if B <= 128:
        return B, tk            # single tile, block dims == full array dims

    fixed = 2 * w1_bytes if tk is None else 2 * tk * 512 * w_itemsize   # w1 buffers
    fixed += 2 * (512 * 256 * w_itemsize)                                # w2
    fixed += 2 * (512 + 256 + 256) * 4                                   # b1/b2/w3
    tm = 128
    for cand in (2048, 1024, 512, 256, 128):
        use = fixed
        use += 2 * cand * xk * 4                 # x tiles (f32, double-buffered)
        use += cand * 512 * 4 + cand * 256 * 4   # f32 h1/h2 temps (or acc scratch)
        use += 2 * cand * 4                      # out row (double-buffered)
        if use <= budget:
            tm = cand
            break
    if B > 256:                                  # >= 2 grid steps -> v7x megacore
        tm = min(tm, _round_up(pl.cdiv(B, 2), 128))
    tm = min(tm, _round_up(B, 128))
    return tm, tk


def _resident_spec(shape, *, single_buffer):
    """BlockSpec with a constant index map (weight stays resident in VMEM)."""
    index_map = lambda *_: (0, 0)
    if single_buffer:
        return pl.BlockSpec(shape, index_map, pipeline_mode=pl.Buffered(1))
    return pl.BlockSpec(shape, index_map)


# ---------------------------------------------------------------------------
# pallas_call wrapper
# ---------------------------------------------------------------------------

def _run_pallas(x, w1, b1, w2, b2, w3, b3, *, use_sigmoid, approx_sigmoid,
                tm, tk, vmem_limit_bytes, single_buffer_weights):
    B, F = x.shape
    num_m = pl.cdiv(B, tm)
    res = functools.partial(_resident_spec, single_buffer=single_buffer_weights)

    w_bytes = w1.dtype.itemsize
    cost = pl.CostEstimate(
        flops=2 * B * (F * 512 + 512 * 256 + 256),
        transcendentals=B if use_sigmoid else 0,
        bytes_accessed=(B * F * 4 + F * 512 * w_bytes + 512 * 256 * w_bytes
                        + (512 + 256 + 256 + 1) * 4 + B * 4),
    )

    if tk is None:
        kernel = functools.partial(_disc_kernel, use_sigmoid=use_sigmoid,
                                   approx_sigmoid=approx_sigmoid)
        grid = (num_m,)
        in_specs = [
            pl.BlockSpec((tm, F), lambda i: (i, 0)),            # x: batch-tiled (f32)
            res((F, 512)),                                      # w1: resident
            res((1, 512)),                                      # b1
            res((512, 256)),                                    # w2: resident
            res((1, 256)),                                      # b2
            res((1, 256)),                                      # w3 row
            pl.BlockSpec(memory_space=pltpu.MemorySpace.SMEM),  # b3 scalar
        ]
        out_specs = pl.BlockSpec((1, tm), lambda i: (0, i))     # lane-dense row
        scratch_shapes = []
        dim_sem = ("parallel",)
    else:
        num_k = pl.cdiv(F, tk)
        kernel = functools.partial(_disc_kernel_ktiled, use_sigmoid=use_sigmoid,
                                   approx_sigmoid=approx_sigmoid)
        grid = (num_m, num_k)                                   # reduction axis last
        in_specs = [
            pl.BlockSpec((tm, tk), lambda i, k: (i, k)),        # x: (M, K) tiled
            pl.BlockSpec((tk, 512), lambda i, k: (k, 0)),       # w1: K tiled
            res((1, 512)),                                      # b1
            res((512, 256)),                                    # w2: resident
            res((1, 256)),                                      # b2
            res((1, 256)),                                      # w3 row
            pl.BlockSpec(memory_space=pltpu.MemorySpace.SMEM),  # b3 scalar
        ]
        out_specs = pl.BlockSpec((1, tm), lambda i, k: (0, i))
        scratch_shapes = [pltpu.VMEM((tm, 512), jnp.float32)]   # layer-1 accumulator
        dim_sem = ("parallel", "arbitrary")

    return pl.pallas_call(
        kernel,
        out_shape=jax.ShapeDtypeStruct((1, B), jnp.float32),
        grid=grid,
        in_specs=in_specs,
        out_specs=out_specs,
        scratch_shapes=scratch_shapes,
        cost_estimate=cost,
        compiler_params=pltpu.CompilerParams(
            dimension_semantics=dim_sem,      # megacore-shard the batch on v7x
            vmem_limit_bytes=vmem_limit_bytes,
        ),
    )(x, w1, b1, w2, b2, w3, b3)


def discriminator_forward(img, params, *, use_sigmoid=True, tm=None, tk=None):
    """img: (B, C, H, W) float32 -> (B,) float32 validities."""
    B = img.shape[0]
    x = img.reshape(B, -1)          # flatten only; bf16 cast happens in-kernel
    F = x.shape[1]

    w1, b1, w2, b2, w3, b3 = params
    approx_sigmoid = bool(w1.dtype != jnp.float32)   # exact sigmoid on f32 path

    budget = _vmem_budget_bytes()
    auto_tm, auto_tk = _choose_tiles(B, F, budget, jnp.dtype(w1.dtype).itemsize)
    if tm is None:
        tm = auto_tm
    if tk is None:
        tk = auto_tk
    if tk is not None:
        assert F % tk == 0, "K-tiled path requires tk to divide the flattened size"

    kwargs = dict(use_sigmoid=use_sigmoid, approx_sigmoid=approx_sigmoid,
                  tm=tm, tk=tk, vmem_limit_bytes=budget)
    try:
        out = _run_pallas(x, w1, b1, w2, b2, w3, b3,
                          single_buffer_weights=True, **kwargs)
    except Exception:
        # pl.Buffered(1) (single-buffered resident weights) not supported on
        # this jax version; fall back to default double-buffered BlockSpecs.
        out = _run_pallas(x, w1, b1, w2, b2, w3, b3,
                          single_buffer_weights=False, **kwargs)

    return out.reshape(-1)[:B]      # matches .view(-1); trims any ragged tail


# ---------------------------------------------------------------------------
# Parameters / reference
# ---------------------------------------------------------------------------

def init_params(key, in_features):
    """Synthetic init matching nn.Linear shapes (weights already transposed
    to (in, out); last layer's weight kept as a (1, 256) row, bias scalar)."""
    k1, k2, k3, k4, k5, k6 = jax.random.split(key, 6)

    def u(k, shape, fan_in):
        bound = 1.0 / jnp.sqrt(fan_in)
        return jax.random.uniform(k, shape, jnp.float32, -bound, bound)

    w1 = u(k1, (in_features, 512), in_features)
    b1 = u(k2, (1, 512), in_features)
    w2 = u(k3, (512, 256), 512)
    b2 = u(k4, (1, 256), 512)
    w3 = u(k5, (1, 256), 256)
    b3 = u(k6, (1,), 256)
    return (w1, b1, w2, b2, w3, b3)


def prepare_params(params, matmul_dtype=jnp.bfloat16):
    """One-time cast of the two big matmul weights (not per forward call).
    Note: bf16 weights/activations are an intentional precision change vs the
    f32 PyTorch model (relevant if discriminator gradients flow through)."""
    w1, b1, w2, b2, w3, b3 = params
    if w1.dtype != matmul_dtype:
        w1 = w1.astype(matmul_dtype)
    if w2.dtype != matmul_dtype:
        w2 = w2.astype(matmul_dtype)
    return (w1, b1, w2, b2, w3, b3)


def _reference_forward(img, params, use_sigmoid=True):
    """Pure-JAX f32 reference."""
    w1, b1, w2, b2, w3, b3 = params
    x = img.reshape(img.shape[0], -1)
    h = x @ w1 + b1
    h = jnp.where(h >= 0, h, 0.2 * h)
    h = h @ w2 + b2
    h = jnp.where(h >= 0, h, 0.2 * h)
    h = h @ w3.T + b3
    if use_sigmoid:
        h = jax.nn.sigmoid(h)
    return h.reshape(-1)


if __name__ == "__main__":
    # img_shape = (1, 16, 16) -> in_features = 256.
    B, C, H, W = 2, 1, 16, 16
    in_features = C * H * W

    key = jax.random.PRNGKey(0)
    k_img, k_params, k_img2 = jax.random.split(key, 3)
    img = jax.random.normal(k_img, (B, C, H, W), dtype=jnp.float32)
    params_f32 = init_params(k_params, in_features)
    params_bf16 = prepare_params(params_f32, jnp.bfloat16)

    # 1) f32 weights, single tile, exact sigmoid: tight check vs reference.
    out = jax.block_until_ready(discriminator_forward(img, params_f32))
    ref = _reference_forward(img, params_f32)
    assert out.shape == (B,)
    assert jnp.allclose(out, ref, atol=1e-3, rtol=1e-3)

    # 2) bf16 fast path, ragged multi-tile batch (B=300 -> two 256-row tiles,
    #    no wrapper-side pad/astype of x).
    B2 = 300
    img2 = jax.random.normal(k_img2, (B2, C, H, W), dtype=jnp.float32)
    out2 = jax.block_until_ready(discriminator_forward(img2, params_bf16))
    ref2 = _reference_forward(img2, params_f32)
    assert out2.shape == (B2,)
    assert jnp.allclose(out2, ref2, atol=2e-2, rtol=2e-2)

    # 3) use_sigmoid=False variant (raw logits), f32 path.
    out3 = jax.block_until_ready(
        discriminator_forward(img, params_f32, use_sigmoid=False))
    ref3 = _reference_forward(img, params_f32, use_sigmoid=False)
    assert jnp.allclose(out3, ref3, atol=1e-3, rtol=1e-3)

    # 4) K-tiled reduction path (forced tk=128 over F=256), bf16, ragged batch.
    out4 = jax.block_until_ready(
        discriminator_forward(img2, params_bf16, tm=128, tk=128))
    assert out4.shape == (B2,)
    assert jnp.allclose(out4, ref2, atol=2e-2, rtol=2e-2)

    print("KERNEL_OK")
</pallas_src>

<mosaic_0001>
module attributes {stable_mosaic.version = 11 : i64} {
  func.func @_disc_kernel(%arg0: i32, %arg1: memref<2x256xf32, #tpu.memory_space<vmem>>, %arg2: memref<256x512xf32, #tpu.memory_space<vmem>>, %arg3: memref<1x512xf32, #tpu.memory_space<vmem>>, %arg4: memref<512x256xf32, #tpu.memory_space<vmem>>, %arg5: memref<1x256xf32, #tpu.memory_space<vmem>>, %arg6: memref<1x256xf32, #tpu.memory_space<vmem>>, %arg7: memref<1xf32, #tpu.memory_space<smem>>, %arg8: memref<1x2xf32, #tpu.memory_space<vmem>>) attributes {dimension_semantics = [#tpu.dimension_semantics<parallel>], iteration_bounds = array<i64: 1>, scalar_prefetch = 0 : i64, scratch_operands = 0 : i64, tpu.core_type = #tpu.core_type<tc>, window_params = [{transform_indices = @transform_0, window_bounds = array<i64: 2, 256>}, {pipeline_mode = #tpu.pipeline_mode<synchronous>, transform_indices = @transform_1, window_bounds = array<i64: 256, 512>}, {pipeline_mode = #tpu.pipeline_mode<synchronous>, transform_indices = @transform_2, window_bounds = array<i64: 1, 512>}, {pipeline_mode = #tpu.pipeline_mode<synchronous>, transform_indices = @transform_3, window_bounds = array<i64: 512, 256>}, {pipeline_mode = #tpu.pipeline_mode<synchronous>, transform_indices = @transform_4, window_bounds = array<i64: 1, 256>}, {pipeline_mode = #tpu.pipeline_mode<synchronous>, transform_indices = @transform_5, window_bounds = array<i64: 1, 256>}, {transform_indices = @transform_6, window_bounds = array<i64: 1>}, {transform_indices = @transform_7, window_bounds = array<i64: 1, 2>}]} {
    %c0 = arith.constant 0 : index
    %c0_0 = arith.constant 0 : index
    %0 = vector.load %arg1[%c0, %c0_0] : memref<2x256xf32, #tpu.memory_space<vmem>>, vector<2x256xf32>
    %c0_1 = arith.constant 0 : index
    %c0_2 = arith.constant 0 : index
    %1 = vector.load %arg2[%c0_1, %c0_2] : memref<256x512xf32, #tpu.memory_space<vmem>>, vector<256x512xf32>
    %cst = arith.constant dense<0.000000e+00> : vector<2x512xf32>
    %2 = tpu.matmul %0, %1, %cst {dimension_numbers = #tpu.dot_dimension_numbers<[1], [0], [0], [1], [0, 0, 1, 1], [], []>} : vector<2x256xf32>, vector<256x512xf32>, vector<2x512xf32> -> vector<2x512xf32>
    %c0_3 = arith.constant 0 : index
    %c0_4 = arith.constant 0 : index
    %3 = vector.load %arg3[%c0_3, %c0_4] : memref<1x512xf32, #tpu.memory_space<vmem>>, vector<1x512xf32>
    %4 = vector.broadcast %3 : vector<1x512xf32> to vector<2x512xf32>
    %5 = arith.addf %2, %4 : vector<2x512xf32>
    %cst_5 = arith.constant 2.000000e-01 : f32
    %6 = vector.broadcast %cst_5 : f32 to vector<2x512xf32>
    %7 = arith.mulf %6, %5 : vector<2x512xf32>
    %8 = arith.maximumf %5, %7 : vector<2x512xf32>
    %c0_6 = arith.constant 0 : index
    %c0_7 = arith.constant 0 : index
    %9 = vector.load %arg4[%c0_6, %c0_7] : memref<512x256xf32, #tpu.memory_space<vmem>>, vector<512x256xf32>
    %cst_8 = arith.constant dense<0.000000e+00> : vector<2x256xf32>
    %10 = tpu.matmul %8, %9, %cst_8 {dimension_numbers = #tpu.dot_dimension_numbers<[1], [0], [0], [1], [0, 0, 1, 1], [], []>} : vector<2x512xf32>, vector<512x256xf32>, vector<2x256xf32> -> vector<2x256xf32>
    %c0_9 = arith.constant 0 : index
    %c0_10 = arith.constant 0 : index
    %11 = vector.load %arg5[%c0_9, %c0_10] : memref<1x256xf32, #tpu.memory_space<vmem>>, vector<1x256xf32>
    %12 = vector.broadcast %11 : vector<1x256xf32> to vector<2x256xf32>
    %13 = arith.addf %10, %12 : vector<2x256xf32>
    %cst_11 = arith.constant 2.000000e-01 : f32
    %14 = vector.broadcast %cst_11 : f32 to vector<2x256xf32>
    %15 = arith.mulf %14, %13 : vector<2x256xf32>
    %16 = arith.maximumf %13, %15 : vector<2x256xf32>
    %c0_12 = arith.constant 0 : index
    %c0_13 = arith.constant 0 : index
    %17 = vector.load %arg6[%c0_12, %c0_13] : memref<1x256xf32, #tpu.memory_space<vmem>>, vector<1x256xf32>
    %18 = vector.broadcast %17 : vector<1x256xf32> to vector<2x256xf32>
    %19 = arith.mulf %16, %18 : vector<2x256xf32>
    %cst_14 = arith.constant dense<0.000000e+00> : vector<2xf32>
    %20 = vector.multi_reduction <add>, %19, %cst_14 [1] : vector<2x256xf32> to vector<2xf32>
    %c0_15 = arith.constant 0 : index
    %21 = memref.load %arg7[%c0_15] : memref<1xf32, #tpu.memory_space<smem>>
    %22 = vector.broadcast %21 : f32 to vector<2xf32>
    %23 = arith.addf %20, %22 : vector<2xf32>
    %cst_16 = arith.constant 0.000000e+00 : f32
    %24 = vector.broadcast %cst_16 : f32 to vector<2xf32>
    %25 = arith.subf %24, %23 : vector<2xf32>
    %26 = math.exp %25 : vector<2xf32>
    %cst_17 = arith.constant 1.000000e+00 : f32
    %27 = vector.broadcast %cst_17 : f32 to vector<2xf32>
    %28 = arith.addf %27, %26 : vector<2xf32>
    %29 = tpu.reciprocal %28 : vector<2xf32> -> vector<2xf32>
    %30 = vector.shape_cast %29 : vector<2xf32> to vector<1x2xf32>
    %c0_18 = arith.constant 0 : index
    %c0_19 = arith.constant 0 : index
    %31 = vector.load %arg8[%c0_18, %c0_19] : memref<1x2xf32, #tpu.memory_space<vmem>>, vector<1x2xf32>
    tpu.vector_store %arg8[%c0_18, %c0_19], %30 {strides = array<i32>} : memref<1x2xf32, #tpu.memory_space<vmem>>, vector<1x2xf32>,
    return
  }
  func.func @transform_0(%arg0: i32) -> (i32, i32) {
    %c0_i32 = arith.constant 0 : i32
    %c0_i32_0 = arith.constant 0 : i32
    return %arg0, %c0_i32 : i32, i32
  }
  func.func @transform_1(%arg0: i32) -> (i32, i32) {
    %c0_i32 = arith.constant 0 : i32
    %c0_i32_0 = arith.constant 0 : i32
    %c0_i32_1 = arith.constant 0 : i32
    return %c0_i32, %c0_i32_0 : i32, i32
  }
  func.func @transform_2(%arg0: i32) -> (i32, i32) {
    %c0_i32 = arith.constant 0 : i32
    %c0_i32_0 = arith.constant 0 : i32
    %c0_i32_1 = arith.constant 0 : i32
    return %c0_i32, %c0_i32_0 : i32, i32
  }
  func.func @transform_3(%arg0: i32) -> (i32, i32) {
    %c0_i32 = arith.constant 0 : i32
    %c0_i32_0 = arith.constant 0 : i32
    %c0_i32_1 = arith.constant 0 : i32
    return %c0_i32, %c0_i32_0 : i32, i32
  }
  func.func @transform_4(%arg0: i32) -> (i32, i32) {
    %c0_i32 = arith.constant 0 : i32
    %c0_i32_0 = arith.constant 0 : i32
    %c0_i32_1 = arith.constant 0 : i32
    return %c0_i32, %c0_i32_0 : i32, i32
  }
  func.func @transform_5(%arg0: i32) -> (i32, i32) {
    %c0_i32 = arith.constant 0 : i32
    %c0_i32_0 = arith.constant 0 : i32
    %c0_i32_1 = arith.constant 0 : i32
    return %c0_i32, %c0_i32_0 : i32, i32
  }
  func.func @transform_6(%arg0: i32) -> i32 {
    %c0_i32 = arith.constant 0 : i32
    %c0_i32_0 = arith.constant 0 : i32
    return %c0_i32 : i32
  }
  func.func @transform_7(%arg0: i32) -> (i32, i32) {
    %c0_i32 = arith.constant 0 : i32
    %c0_i32_0 = arith.constant 0 : i32
    return %c0_i32, %arg0 : i32, i32
  }
}

module attributes {stable_mosaic.version = 11 : i64} {
  func.func @_disc_kernel(%arg0: i32, %arg1: memref<2x256xf32, #tpu.memory_space<vmem>>, %arg2: memref<256x512xf32, #tpu.memory_space<vmem>>, %arg3: memref<1x512xf32, #tpu.memory_space<vmem>>, %arg4: memref<512x256xf32, #tpu.memory_space<vmem>>, %arg5: memref<1x256xf32, #tpu.memory_space<vmem>>, %arg6: memref<1x256xf32, #tpu.memory_space<vmem>>, %arg7: memref<1xf32, #tpu.memory_space<smem>>, %arg8: memref<1x2xf32, #tpu.memory_space<vmem>>) attributes {dimension_semantics = [#tpu.dimension_semantics<parallel>], iteration_bounds = array<i64: 1>, scalar_prefetch = 0 : i64, scratch_operands = 0 : i64, tpu.core_type = #tpu.core_type<tc>, window_params = [{transform_indices = @transform_0, window_bounds = array<i64: 2, 256>}, {pipeline_mode = #tpu.pipeline_mode<synchronous>, transform_indices = @transform_1, window_bounds = array<i64: 256, 512>}, {pipeline_mode = #tpu.pipeline_mode<synchronous>, transform_indices = @transform_2, window_bounds = array<i64: 1, 512>}, {pipeline_mode = #tpu.pipeline_mode<synchronous>, transform_indices = @transform_3, window_bounds = array<i64: 512, 256>}, {pipeline_mode = #tpu.pipeline_mode<synchronous>, transform_indices = @transform_4, window_bounds = array<i64: 1, 256>}, {pipeline_mode = #tpu.pipeline_mode<synchronous>, transform_indices = @transform_5, window_bounds = array<i64: 1, 256>}, {transform_indices = @transform_6, window_bounds = array<i64: 1>}, {transform_indices = @transform_7, window_bounds = array<i64: 1, 2>}]} {
    %c0 = arith.constant 0 : index
    %c0_0 = arith.constant 0 : index
    %0 = vector.load %arg1[%c0, %c0_0] : memref<2x256xf32, #tpu.memory_space<vmem>>, vector<2x256xf32>
    %c0_1 = arith.constant 0 : index
    %c0_2 = arith.constant 0 : index
    %1 = vector.load %arg2[%c0_1, %c0_2] : memref<256x512xf32, #tpu.memory_space<vmem>>, vector<256x512xf32>
    %cst = arith.constant dense<0.000000e+00> : vector<2x512xf32>
    %2 = tpu.matmul %0, %1, %cst {dimension_numbers = #tpu.dot_dimension_numbers<[1], [0], [0], [1], [0, 0, 1, 1], [], []>} : vector<2x256xf32>, vector<256x512xf32>, vector<2x512xf32> -> vector<2x512xf32>
    %c0_3 = arith.constant 0 : index
    %c0_4 = arith.constant 0 : index
    %3 = vector.load %arg3[%c0_3, %c0_4] : memref<1x512xf32, #tpu.memory_space<vmem>>, vector<1x512xf32>
    %4 = vector.broadcast %3 : vector<1x512xf32> to vector<2x512xf32>
    %5 = arith.addf %2, %4 : vector<2x512xf32>
    %cst_5 = arith.constant 2.000000e-01 : f32
    %6 = vector.broadcast %cst_5 : f32 to vector<2x512xf32>
    %7 = arith.mulf %6, %5 : vector<2x512xf32>
    %8 = arith.maximumf %5, %7 : vector<2x512xf32>
    %c0_6 = arith.constant 0 : index
    %c0_7 = arith.constant 0 : index
    %9 = vector.load %arg4[%c0_6, %c0_7] : memref<512x256xf32, #tpu.memory_space<vmem>>, vector<512x256xf32>
    %cst_8 = arith.constant dense<0.000000e+00> : vector<2x256xf32>
    %10 = tpu.matmul %8, %9, %cst_8 {dimension_numbers = #tpu.dot_dimension_numbers<[1], [0], [0], [1], [0, 0, 1, 1], [], []>} : vector<2x512xf32>, vector<512x256xf32>, vector<2x256xf32> -> vector<2x256xf32>
    %c0_9 = arith.constant 0 : index
    %c0_10 = arith.constant 0 : index
    %11 = vector.load %arg5[%c0_9, %c0_10] : memref<1x256xf32, #tpu.memory_space<vmem>>, vector<1x256xf32>
    %12 = vector.broadcast %11 : vector<1x256xf32> to vector<2x256xf32>
    %13 = arith.addf %10, %12 : vector<2x256xf32>
    %cst_11 = arith.constant 2.000000e-01 : f32
    %14 = vector.broadcast %cst_11 : f32 to vector<2x256xf32>
    %15 = arith.mulf %14, %13 : vector<2x256xf32>
    %16 = arith.maximumf %13, %15 : vector<2x256xf32>
    %c0_12 = arith.constant 0 : index
    %c0_13 = arith.constant 0 : index
    %17 = vector.load %arg6[%c0_12, %c0_13] : memref<1x256xf32, #tpu.memory_space<vmem>>, vector<1x256xf32>
    %18 = vector.broadcast %17 : vector<1x256xf32> to vector<2x256xf32>
    %19 = arith.mulf %16, %18 : vector<2x256xf32>
    %cst_14 = arith.constant dense<0.000000e+00> : vector<2xf32>
    %20 = vector.multi_reduction <add>, %19, %cst_14 [1] : vector<2x256xf32> to vector<2xf32>
    %c0_15 = arith.constant 0 : index
    %21 = memref.load %arg7[%c0_15] : memref<1xf32, #tpu.memory_space<smem>>
    %22 = vector.broadcast %21 : f32 to vector<2xf32>
    %23 = arith.addf %20, %22 : vector<2xf32>
    %cst_16 = arith.constant 0.000000e+00 : f32
    %24 = vector.broadcast %cst_16 : f32 to vector<2xf32>
    %25 = arith.subf %24, %23 : vector<2xf32>
    %26 = math.exp %25 : vector<2xf32>
    %cst_17 = arith.constant 1.000000e+00 : f32
    %27 = vector.broadcast %cst_17 : f32 to vector<2xf32>
    %28 = arith.addf %27, %26 : vector<2xf32>
    %29 = tpu.reciprocal %28 : vector<2xf32> -> vector<2xf32>
    %30 = vector.shape_cast %29 : vector<2xf32> to vector<1x2xf32>
    %c0_18 = arith.constant 0 : index
    %c0_19 = arith.constant 0 : index
    %31 = vector.load %arg8[%c0_18, %c0_19] : memref<1x2xf32, #tpu.memory_space<vmem>>, vector<1x2xf32>
    tpu.vector_store %arg8[%c0_18, %c0_19], %30 {strides = array<i32>} : memref<1x2xf32, #tpu.memory_space<vmem>>, vector<1x2xf32>,
    return
  }
  func.func @transform_0(%arg0: i32) -> (i32, i32) {
    %c0_i32 = arith.constant 0 : i32
    %c0_i32_0 = arith.constant 0 : i32
    return %arg0, %c0_i32 : i32, i32
  }
  func.func @transform_1(%arg0: i32) -> (i32, i32) {
    %c0_i32 = arith.constant 0 : i32
    %c0_i32_0 = arith.constant 0 : i32
    %c0_i32_1 = arith.constant 0 : i32
    return %c0_i32, %c0_i32_0 : i32, i32
  }
  func.func @transform_2(%arg0: i32) -> (i32, i32) {
    %c0_i32 = arith.constant 0 : i32
    %c0_i32_0 = arith.constant 0 : i32
    %c0_i32_1 = arith.constant 0 : i32
    return %c0_i32, %c0_i32_0 : i32, i32
  }
  func.func @transform_3(%arg0: i32) -> (i32, i32) {
    %c0_i32 = arith.constant 0 : i32
    %c0_i32_0 = arith.constant 0 : i32
    %c0_i32_1 = arith.constant 0 : i32
    return %c0_i32, %c0_i32_0 : i32, i32
  }
  func.func @transform_4(%arg0: i32) -> (i32, i32) {
    %c0_i32 = arith.constant 0 : i32
    %c0_i32_0 = arith.constant 0 : i32
    %c0_i32_1 = arith.constant 0 : i32
    return %c0_i32, %c0_i32_0 : i32, i32
  }
  func.func @transform_5(%arg0: i32) -> (i32, i32) {
    %c0_i32 = arith.constant 0 : i32
    %c0_i32_0 = arith.constant 0 : i32
    %c0_i32_1 = arith.constant 0 : i32
    return %c0_i32, %c0_i32_0 : i32, i32
  }
  func.func @transform_6(%arg0: i32) -> i32 {
    %c0_i32 = arith.constant 0 : i32
    %c0_i32_0 = arith.constant 0 : i32
    return %c0_i32 : i32
  }
  func.func @transform_7(%arg0: i32) -> (i32, i32) {
    %c0_i32 = arith.constant 0 : i32
    %c0_i32_0 = arith.constant 0 : i32
    return %c0_i32, %arg0 : i32, i32
  }
}

</mosaic_0001>

<llo_original>
// kernel: tpu_custom_call.1
$region0: #{tpu_custom_call.1}
  #allocation0 [shape = 'u32[]', space=smem, size = 0x4, offset = 0x4, fixed_abs, tag = 'smem constant byte address 0x4 - core index']
  #allocation1 [shape = 'u32[144,128]{1,0:T(1,128)}', space=vmem, size = 0x12000, scoped, tag = 'internal scratch']
  #allocation2 [shape = 'f32[1]{0:T(128)S(6)}', space=smem, size = 0x200, scoped, tag = 'scoped memory for tpu_custom_call.1']
  %s0 = inlined_call_operand.hbm [shape: f32[2,256], index: 0, kind: input, shape index: {}]
  %s1 = inlined_call_operand.hbm [shape: f32[256,512], index: 1, kind: input, shape index: {}]
  %s2 = inlined_call_operand.vmem [shape: f32[1,512], index: 2, kind: input, shape index: {}]
  %s3 = inlined_call_operand.hbm [shape: f32[512,256], index: 3, kind: input, shape index: {}]
  %s4 = inlined_call_operand.vmem [shape: f32[1,256], index: 4, kind: input, shape index: {}]
  %s5 = inlined_call_operand.vmem [shape: f32[1,256], index: 5, kind: input, shape index: {}]
  %s6 = inlined_call_operand.<no memory space> [shape: f32[1], index: 6, kind: input, shape index: {}]
  %s7 = inlined_call_operand.hbm [shape: f32[1,2], index: 7, kind: output, shape index: {}]
  %s8 = sld [smem:[#allocation0]]
  $region50: #{tpu_custom_call.1} parent=0
    _
  %s10 = ssub.s32 1, %s8
  %s11 = scalar_select 0, %s10, %s8
  %12 = sst [smem:[#allocation2]] %s6
  $region1: #{tpu_custom_call.1} parent=0
    #allocation3 [shape = 'u8[2048]{0}', space=vmem, size = 0x800, scoped, tag = 'input window, operand 0, single buffered']
    #allocation4 [shape = 's32[1]{0}', space=sflag, size = 0x4, scoped, tag = 'scoped memory for tpu_custom_call.1']
    #allocation5 [shape = 's32[1]{0}', space=sflag, size = 0x4, scoped, tag = 'scoped memory for tpu_custom_call.1']
    #allocation6 [shape = 'u8[524288]{0}', space=vmem, size = 0x80000, scoped, tag = 'input window, operand 1, single buffered']
    #allocation7 [shape = 's32[1]{0}', space=sflag, size = 0x4, scoped, tag = 'scoped memory for tpu_custom_call.1']
    #allocation8 [shape = 'u8[524288]{0}', space=vmem, size = 0x80000, scoped, tag = 'input window, operand 3, single buffered']
    #allocation9 [shape = 'u8[512]{0}', space=vmem, size = 0x400, scoped, tag = 'output window, operand 0, single buffered']
    %13 = vsyncpa [#allocation4], 0
    %14 = vsyncpa [#allocation7], 0
    %15 = vsyncpa [#allocation5], 0
    // Predicated region
    $region2: #{tpu_custom_call.1} parent=1 // pred_check
      _
    $region3: #{tpu_custom_call.1} parent=1 // pred_check_branch
      %17 = sbr.rel (0) target = $region5
    $region4: #{tpu_custom_call.1} parent=1 // pred_region
      %s19 = ssub.s32 64, 64
      %20 = vsyncadd [#allocation4], %s19
      %s22 = sshll.u32 [#allocation3], 4
      %s23 = int_to_ptr.vmem [resolvable:$true] %s22
      %25 = dma.hbm_to_vmem [thread:$0]  %s0, 64, %s23, [#allocation4]
    $region5: #{tpu_custom_call.1} parent=1 // pred_fallthru
      _
    // Predicated region
    $region6: #{tpu_custom_call.1} parent=1 // pred_check
      _
    $region7: #{tpu_custom_call.1} parent=1 // pred_check_branch
      %27 = sbr.rel (0) target = $region9
    $region8: #{tpu_custom_call.1} parent=1 // pred_region
      %s29 = ssub.s32 16384, 16384
      %30 = vsyncadd [#allocation7], %s29
      %s31 = sshll.u32 [#allocation6], 4
      %s32 = int_to_ptr.vmem [resolvable:$true] %s31
      %37 = dma.hbm_to_vmem [thread:$0]  %s1, 16384, %s32, [#allocation7], 512, 512, 32
    $region9: #{tpu_custom_call.1} parent=1 // pred_fallthru
      _
    // Predicated region
    $region10: #{tpu_custom_call.1} parent=1 // pred_check
      _
    $region11: #{tpu_custom_call.1} parent=1 // pred_check_branch
      %39 = sbr.rel (0) target = $region13
    $region12: #{tpu_custom_call.1} parent=1 // pred_region
      _
    $region13: #{tpu_custom_call.1} parent=1 // pred_fallthru
      _
    // Predicated region
    $region14: #{tpu_custom_call.1} parent=1 // pred_check
      _
    $region15: #{tpu_custom_call.1} parent=1 // pred_check_branch
      %41 = sbr.rel (0) target = $region17
    $region16: #{tpu_custom_call.1} parent=1 // pred_region
      %s43 = ssub.s32 16384, 16384
      %44 = vsyncadd [#allocation7], %s43
      %s45 = sshll.u32 [#allocation8], 4
      %s46 = int_to_ptr.vmem [resolvable:$true] %s45
      %51 = dma.hbm_to_vmem [thread:$0]  %s3, 16384, %s46, [#allocation7], 256, 256, 16
    $region17: #{tpu_custom_call.1} parent=1 // pred_fallthru
      _
    // Predicated region
    $region18: #{tpu_custom_call.1} parent=1 // pred_check
      _
    $region19: #{tpu_custom_call.1} parent=1 // pred_check_branch
      %53 = sbr.rel (0) target = $region21
    $region20: #{tpu_custom_call.1} parent=1 // pred_region
      _
    $region21: #{tpu_custom_call.1} parent=1 // pred_fallthru
      _
    // Predicated region
    $region22: #{tpu_custom_call.1} parent=1 // pred_check
      _
    $region23: #{tpu_custom_call.1} parent=1 // pred_check_branch
      %55 = sbr.rel (0) target = $region25
    $region24: #{tpu_custom_call.1} parent=1 // pred_region
      _
    $region25: #{tpu_custom_call.1} parent=1 // pred_fallthru
      _
    // Predicated region
    $region26: #{tpu_custom_call.1} parent=1 // pred_check
      _
    $region27: #{tpu_custom_call.1} parent=1 // pred_check_branch
      %57 = sbr.rel (0) target = $region29
    $region28: #{tpu_custom_call.1} parent=1 // pred_region
      _
    $region29: #{tpu_custom_call.1} parent=1 // pred_fallthru
      _
    // Predicated region
    $region30: #{tpu_custom_call.1} parent=1 // pred_check
      _
    $region31: #{tpu_custom_call.1} parent=1 // pred_check_branch
      %59 = sbr.rel (0) target = $region33
    $region32: #{tpu_custom_call.1} parent=1 // pred_region
      %60 = dma.done [#allocation4], 64
    $region33: #{tpu_custom_call.1} parent=1 // pred_fallthru
      _
    // Predicated region
    $region34: #{tpu_custom_call.1} parent=1 // pred_check
      _
    $region35: #{tpu_custom_call.1} parent=1 // pred_check_branch
      %62 = sbr.rel (0) target = $region37
    $region36: #{tpu_custom_call.1} parent=1 // pred_region
      %63 = dma.done [#allocation7], 16384
    $region37: #{tpu_custom_call.1} parent=1 // pred_fallthru
      _
    // Predicated region
    $region38: #{tpu_custom_call.1} parent=1 // pred_check
      _
    $region39: #{tpu_custom_call.1} parent=1 // pred_check_branch
      %65 = sbr.rel (0) target = $region41
    $region40: #{tpu_custom_call.1} parent=1 // pred_region
      %66 = dma.done [#allocation7], 16384
    $region41: #{tpu_custom_call.1} parent=1 // pred_fallthru
      _
    %v67 = vld [vmem:[#allocation3] sm:$0xf]
    %v68 = vld [vmem:[#allocation6] sm:$0xff]
    %v69 = vld [vmem:[#allocation6 + $0x8] sm:$0xff]
    %v70 = vld [vmem:[#allocation6 + $0x10] sm:$0xff]
    %v71 = vld [vmem:[#allocation6 + $0x18] sm:$0xff]
    %v72 = vld [vmem:[#allocation6 + $0x20] sm:$0xff]
    %v73 = vld [vmem:[#allocation6 + $0x28] sm:$0xff]
    %v74 = vld [vmem:[#allocation6 + $0x30] sm:$0xff]
    %v75 = vld [vmem:[#allocation6 + $0x38] sm:$0xff]
    %v76 = vld [vmem:[#allocation6 + $0x40] sm:$0xff]
    %v77 = vld [vmem:[#allocation6 + $0x48] sm:$0xff]
    %v78 = vld [vmem:[#allocation6 + $0x50] sm:$0xff]
    %v79 = vld [vmem:[#allocation6 + $0x58] sm:$0xff]
    %v80 = vld [vmem:[#allocation6 + $0x60] sm:$0xff]
    %v81 = vld [vmem:[#allocation6 + $0x68] sm:$0xff]
    %v82 = vld [vmem:[#allocation6 + $0x70] sm:$0xff]
    %v83 = vld [vmem:[#allocation6 + $0x78] sm:$0xff]
    %v84 = vld [vmem:[#allocation6 + $0x80] sm:$0xff]
    %v85 = vld [vmem:[#allocation6 + $0x88] sm:$0xff]
    %v86 = vld [vmem:[#allocation6 + $0x90] sm:$0xff]
    %v87 = vld [vmem:[#allocation6 + $0x98] sm:$0xff]
    %v88 = vld [vmem:[#allocation6 + $0xa0] sm:$0xff]
    %v89 = vld [vmem:[#allocation6 + $0xa8] sm:$0xff]
    %v90 = vld [vmem:[#allocation6 + $0xb0] sm:$0xff]
    %v91 = vld [vmem:[#allocation6 + $0xb8] sm:$0xff]
    %v92 = vld [vmem:[#allocation6 + $0xc0] sm:$0xff]
    %v93 = vld [vmem:[#allocation6 + $0xc8] sm:$0xff]
    %v94 = vld [vmem:[#allocation6 + $0xd0] sm:$0xff]
    %v95 = vld [vmem:[#allocation6 + $0xd8] sm:$0xff]
    %v96 = vld [vmem:[#allocation6 + $0xe0] sm:$0xff]
    %v97 = vld [vmem:[#allocation6 + $0xe8] sm:$0xff]
    %v98 = vld [vmem:[#allocation6 + $0xf0] sm:$0xff]
    %v99 = vld [vmem:[#allocation6 + $0xf8] sm:$0xff]
    %v100 = vld [vmem:[#allocation6 + $0x100] sm:$0xff]
    %v101 = vld [vmem:[#allocation6 + $0x108] sm:$0xff]
    %v102 = vld [vmem:[#allocation6 + $0x110] sm:$0xff]
    %v103 = vld [vmem:[#allocation6 + $0x118] sm:$0xff]
    %v104 = vld [vmem:[#allocation6 + $0x120] sm:$0xff]
    %v105 = vld [vmem:[#allocation6 + $0x128] sm:$0xff]
    %v106 = vld [vmem:[#allocation6 + $0x130] sm:$0xff]
    %v107 = vld [vmem:[#allocation6 + $0x138] sm:$0xff]
    %v108 = vld [vmem:[#allocation6 + $0x140] sm:$0xff]
    %v109 = vld [vmem:[#allocation6 + $0x148] sm:$0xff]
    %v110 = vld [vmem:[#allocation6 + $0x150] sm:$0xff]
    %v111 = vld [vmem:[#allocation6 + $0x158] sm:$0xff]
    %v112 = vld [vmem:[#allocation6 + $0x160] sm:$0xff]
    %v113 = vld [vmem:[#allocation6 + $0x168] sm:$0xff]
    %v114 = vld [vmem:[#allocation6 + $0x170] sm:$0xff]
    %v115 = vld [vmem:[#allocation6 + $0x178] sm:$0xff]
    %v116 = vld [vmem:[#allocation6 + $0x180] sm:$0xff]
    %v117 = vld [vmem:[#allocation6 + $0x188] sm:$0xff]
    %v118 = vld [vmem:[#allocation6 + $0x190] sm:$0xff]
    %v119 = vld [vmem:[#allocation6 + $0x198] sm:$0xff]
    %v120 = vld [vmem:[#allocation6 + $0x1a0] sm:$0xff]
    %v121 = vld [vmem:[#allocation6 + $0x1a8] sm:$0xff]
    %v122 = vld [vmem:[#allocation6 + $0x1b0] sm:$0xff]
    %v123 = vld [vmem:[#allocation6 + $0x1b8] sm:$0xff]
    %v124 = vld [vmem:[#allocation6 + $0x1c0] sm:$0xff]
    %v125 = vld [vmem:[#allocation6 + $0x1c8] sm:$0xff]
    %v126 = vld [vmem:[#allocation6 + $0x1d0] sm:$0xff]
    %v127 = vld [vmem:[#allocation6 + $0x1d8] sm:$0xff]
    %v128 = vld [vmem:[#allocation6 + $0x1e0] sm:$0xff]
    %v129 = vld [vmem:[#allocation6 + $0x1e8] sm:$0xff]
    %v130 = vld [vmem:[#allocation6 + $0x1f0] sm:$0xff]
    %v131 = vld [vmem:[#allocation6 + $0x1f8] sm:$0xff]
    %v132 = vld [vmem:[#allocation6 + $0x200] sm:$0xff]
    %v133 = vld [vmem:[#allocation6 + $0x208] sm:$0xff]
    %v134 = vld [vmem:[#allocation6 + $0x210] sm:$0xff]
    %v135 = vld [vmem:[#allocation6 + $0x218] sm:$0xff]
    %v136 = vld [vmem:[#allocation6 + $0x220] sm:$0xff]
    %v137 = vld [vmem:[#allocation6 + $0x228] sm:$0xff]
    %v138 = vld [vmem:[#allocation6 + $0x230] sm:$0xff]
    %v139 = vld [vmem:[#allocation6 + $0x238] sm:$0xff]
    %v140 = vld [vmem:[#allocation6 + $0x240] sm:$0xff]
    %v141 = vld [vmem:[#allocation6 + $0x248] sm:$0xff]
    %v142 = vld [vmem:[#allocation6 + $0x250] sm:$0xff]
    %v143 = vld [vmem:[#allocation6 + $0x258] sm:$0xff]
    %v144 = vld [vmem:[#allocation6 + $0x260] sm:$0xff]
    %v145 = vld [vmem:[#allocation6 + $0x268] sm:$0xff]
    %v146 = vld [vmem:[#allocation6 + $0x270] sm:$0xff]
    %v147 = vld [vmem:[#allocation6 + $0x278] sm:$0xff]
    %v148 = vld [vmem:[#allocation6 + $0x280] sm:$0xff]
    %v149 = vld [vmem:[#allocation6 + $0x288] sm:$0xff]
    %v150 = vld [vmem:[#allocation6 + $0x290] sm:$0xff]
    %v151 = vld [vmem:[#allocation6 + $0x298] sm:$0xff]
    %v152 = vld [vmem:[#allocation6 + $0x2a0] sm:$0xff]
    %v153 = vld [vmem:[#allocation6 + $0x2a8] sm:$0xff]
    %v154 = vld [vmem:[#allocation6 + $0x2b0] sm:$0xff]
    %v155 = vld [vmem:[#allocation6 + $0x2b8] sm:$0xff]
    %v156 = vld [vmem:[#allocation6 + $0x2c0] sm:$0xff]
    %v157 = vld [vmem:[#allocation6 + $0x2c8] sm:$0xff]
    %v158 = vld [vmem:[#allocation6 + $0x2d0] sm:$0xff]
    %v159 = vld [vmem:[#allocation6 + $0x2d8] sm:$0xff]
    %v160 = vld [vmem:[#allocation6 + $0x2e0] sm:$0xff]
    %v161 = vld [vmem:[#allocation6 + $0x2e8] sm:$0xff]
    %v162 = vld [vmem:[#allocation6 + $0x2f0] sm:$0xff]
    %v163 = vld [vmem:[#allocation6 + $0x2f8] sm:$0xff]
    %v164 = vld [vmem:[#allocation6 + $0x300] sm:$0xff]
    %v165 = vld [vmem:[#allocation6 + $0x308] sm:$0xff]
    %v166 = vld [vmem:[#allocation6 + $0x310] sm:$0xff]
    %v167 = vld [vmem:[#allocation6 + $0x318] sm:$0xff]
    %v168 = vld [vmem:[#allocation6 + $0x320] sm:$0xff]
    %v169 = vld [vmem:[#allocation6 + $0x328] sm:$0xff]
    %v170 = vld [vmem:[#allocation6 + $0x330] sm:$0xff]
    %v171 = vld [vmem:[#allocation6 + $0x338] sm:$0xff]
    %v172 = vld [vmem:[#allocation6 + $0x340] sm:$0xff]
    %v173 = vld [vmem:[#allocation6 + $0x348] sm:$0xff]
    %v174 = vld [vmem:[#allocation6 + $0x350] sm:$0xff]
    %v175 = vld [vmem:[#allocation6 + $0x358] sm:$0xff]
    %v176 = vld [vmem:[#allocation6 + $0x360] sm:$0xff]
    %v177 = vld [vmem:[#allocation6 + $0x368] sm:$0xff]
    %v178 = vld [vmem:[#allocation6 + $0x370] sm:$0xff]
    %v179 = vld [vmem:[#allocation6 + $0x378] sm:$0xff]
    %v180 = vld [vmem:[#allocation6 + $0x380] sm:$0xff]
    %v181 = vld [vmem:[#allocation6 + $0x388] sm:$0xff]
    %v182 = vld [vmem:[#allocation6 + $0x390] sm:$0xff]
    %v183 = vld [vmem:[#allocation6 + $0x398] sm:$0xff]
    %v184 = vld [vmem:[#allocation6 + $0x3a0] sm:$0xff]
    %v185 = vld [vmem:[#allocation6 + $0x3a8] sm:$0xff]
    %v186 = vld [vmem:[#allocation6 + $0x3b0] sm:$0xff]
    %v187 = vld [vmem:[#allocation6 + $0x3b8] sm:$0xff]
    %v188 = vld [vmem:[#allocation6 + $0x3c0] sm:$0xff]
    %v189 = vld [vmem:[#allocation6 + $0x3c8] sm:$0xff]
    %v190 = vld [vmem:[#allocation6 + $0x3d0] sm:$0xff]
    %v191 = vld [vmem:[#allocation6 + $0x3d8] sm:$0xff]
    %v192 = vld [vmem:[#allocation6 + $0x3e0] sm:$0xff]
    %v193 = vld [vmem:[#allocation6 + $0x3e8] sm:$0xff]
    %v194 = vld [vmem:[#allocation6 + $0x3f0] sm:$0xff]
    %v195 = vld [vmem:[#allocation6 + $0x3f8] sm:$0xff]
    %v196 = vld [vmem:[%s2] sm:$0xf]
    %v198 = vlaneseq
    %v199 = vshrl.u32 %v198, 7
    %v200 = vsub.s32 0, %v199
    %v201 = vrot.slane %v196, %v200
    %v202 = vlaneseq
    %v203 = vshrl.u32 %v202, 7
    %v204 = vsub.s32 1, %v203
    %v205 = vrot.slane %v196, %v204
    %v206 = vlaneseq
    %v207 = vshrl.u32 %v206, 7
    %v208 = vsub.s32 2, %v207
    %v209 = vrot.slane %v196, %v208
    %v210 = vlaneseq
    %v211 = vshrl.u32 %v210, 7
    %v212 = vsub.s32 3, %v211
    %v213 = vrot.slane %v196, %v212
    %v220 = vunpack.c.l.s4 1983009808
    %v221 = vunpack.c.0.s8 %v220
    %v222 = vlaneseq
    %v223 = vshrl.u32 %v222, 7
    %v224 = vsub.s32 %v221, %v223
    %v225 = vrot.slane %v67, %v224
    %v226 = vcombine.high %v225, %v225
    %229 = vmatprep.subr.mxu0 %v69
    %230 = vmatpush1.msra.mxu0 %v68
    %231 = vmatprep.subr.mxu0 %v73
    %232 = vmatpush1.msra.mxu0 %v72
    %233 = vmatprep.subr.mxu0 %v77
    %234 = vmatpush1.msra.mxu0 %v76
    %235 = vmatprep.subr.mxu0 %v81
    %236 = vmatpush1.msra.mxu0 %v80
    %237 = vmatprep.subr.mxu0 %v85
    %238 = vmatpush1.msra.mxu0 %v84
    %239 = vmatprep.subr.mxu0 %v89
    %240 = vmatpush1.msra.mxu0 %v88
    %241 = vmatprep.subr.mxu0 %v93
    %242 = vmatpush1.msra.mxu0 %v92
    %243 = vmatprep.subr.mxu0 %v97
    %244 = vmatpush1.msra.mxu0 %v96
    %245 = vmatprep.subr.mxu0 %v101
    %246 = vmatpush1.msra.mxu0 %v100
    %247 = vmatprep.subr.mxu0 %v105
    %248 = vmatpush1.msra.mxu0 %v104
    %249 = vmatprep.subr.mxu0 %v109
    %250 = vmatpush1.msra.mxu0 %v108
    %251 = vmatprep.subr.mxu0 %v113
    %252 = vmatpush1.msra.mxu0 %v112
    %253 = vmatprep.subr.mxu0 %v117
    %254 = vmatpush1.msra.mxu0 %v116
    %255 = vmatprep.subr.mxu0 %v121
    %256 = vmatpush1.msra.mxu0 %v120
    %257 = vmatprep.subr.mxu0 %v125
    %258 = vmatpush1.msra.mxu0 %v124
    %259 = vmatprep.subr.mxu0 %v129
    %260 = vmatpush1.msra.mxu0 %v128
    %261 = vmatprep.subr.mxu0 %v133
    %262 = vmatpush1.msra.mxu0 %v132
    %263 = vmatprep.subr.mxu0 %v137
    %264 = vmatpush1.msra.mxu0 %v136
    %265 = vmatprep.subr.mxu0 %v141
    %266 = vmatpush1.msra.mxu0 %v140
    %267 = vmatprep.subr.mxu0 %v145
    %268 = vmatpush1.msra.mxu0 %v144
    %269 = vmatprep.subr.mxu0 %v149
    %270 = vmatpush1.msra.mxu0 %v148
    %271 = vmatprep.subr.mxu0 %v153
    %272 = vmatpush1.msra.mxu0 %v152
    %273 = vmatprep.subr.mxu0 %v157
    %274 = vmatpush1.msra.mxu0 %v156
    %275 = vmatprep.subr.mxu0 %v161
    %276 = vmatpush1.msra.mxu0 %v160
    %277 = vmatprep.subr.mxu0 %v165
    %278 = vmatpush1.msra.mxu0 %v164
    %279 = vmatprep.subr.mxu0 %v169
    %280 = vmatpush1.msra.mxu0 %v168
    %281 = vmatprep.subr.mxu0 %v173
    %282 = vmatpush1.msra.mxu0 %v172
    %283 = vmatprep.subr.mxu0 %v177
    %284 = vmatpush1.msra.mxu0 %v176
    %285 = vmatprep.subr.mxu0 %v181
    %286 = vmatpush1.msra.mxu0 %v180
    %287 = vmatprep.subr.mxu0 %v185
    %288 = vmatpush1.msra.mxu0 %v184
    %289 = vmatprep.subr.mxu0 %v189
    %290 = vmatpush1.msra.mxu0 %v188
    %291 = vmatprep.subr.mxu0 %v193
    %292 = vmatpush1.msra.mxu0 %v192
    %293 = vmatprep.mubr.f32.mxu0 %v226
    %294 = vmatmul.mubr.f32.gmra.mrb[0].mxu0 %v225
    %v295 = vpop.f32.mrb[0].mxu0
    %v296 = vadd.f32 %v201, %v295
    %v297 = vpop.f32.mrb[0].mxu0
    %v298 = vadd.f32 %v205, %v297
    %299 = vdwg.mxu0
    %300 = vmatprep.subr.mxu0 %v71
    %301 = vmatpush1.msra.mxu0 %v70
    %302 = vmatprep.subr.mxu0 %v75
    %303 = vmatpush1.msra.mxu0 %v74
    %304 = vmatprep.subr.mxu0 %v79
    %305 = vmatpush1.msra.mxu0 %v78
    %306 = vmatprep.subr.mxu0 %v83
    %307 = vmatpush1.msra.mxu0 %v82
    %308 = vmatprep.subr.mxu0 %v87
    %309 = vmatpush1.msra.mxu0 %v86
    %310 = vmatprep.subr.mxu0 %v91
    %311 = vmatpush1.msra.mxu0 %v90
    %312 = vmatprep.subr.mxu0 %v95
    %313 = vmatpush1.msra.mxu0 %v94
    %314 = vmatprep.subr.mxu0 %v99
    %315 = vmatpush1.msra.mxu0 %v98
    %316 = vmatprep.subr.mxu0 %v103
    %317 = vmatpush1.msra.mxu0 %v102
    %318 = vmatprep.subr.mxu0 %v107
    %319 = vmatpush1.msra.mxu0 %v106
    %320 = vmatprep.subr.mxu0 %v111
    %321 = vmatpush1.msra.mxu0 %v110
    %322 = vmatprep.subr.mxu0 %v115
    %323 = vmatpush1.msra.mxu0 %v114
    %324 = vmatprep.subr.mxu0 %v119
    %325 = vmatpush1.msra.mxu0 %v118
    %326 = vmatprep.subr.mxu0 %v123
    %327 = vmatpush1.msra.mxu0 %v122
    %328 = vmatprep.subr.mxu0 %v127
    %329 = vmatpush1.msra.mxu0 %v126
    %330 = vmatprep.subr.mxu0 %v131
    %331 = vmatpush1.msra.mxu0 %v130
    %332 = vmatprep.subr.mxu0 %v135
    %333 = vmatpush1.msra.mxu0 %v134
    %334 = vmatprep.subr.mxu0 %v139
    %335 = vmatpush1.msra.mxu0 %v138
    %336 = vmatprep.subr.mxu0 %v143
    %337 = vmatpush1.msra.mxu0 %v142
    %338 = vmatprep.subr.mxu0 %v147
    %339 = vmatpush1.msra.mxu0 %v146
    %340 = vmatprep.subr.mxu0 %v151
    %341 = vmatpush1.msra.mxu0 %v150
    %342 = vmatprep.subr.mxu0 %v155
    %343 = vmatpush1.msra.mxu0 %v154
    %344 = vmatprep.subr.mxu0 %v159
    %345 = vmatpush1.msra.mxu0 %v158
    %346 = vmatprep.subr.mxu0 %v163
    %347 = vmatpush1.msra.mxu0 %v162
    %348 = vmatprep.subr.mxu0 %v167
    %349 = vmatpush1.msra.mxu0 %v166
    %350 = vmatprep.subr.mxu0 %v171
    %351 = vmatpush1.msra.mxu0 %v170
    %352 = vmatprep.subr.mxu0 %v175
    %353 = vmatpush1.msra.mxu0 %v174
    %354 = vmatprep.subr.mxu0 %v179
    %355 = vmatpush1.msra.mxu0 %v178
    %356 = vmatprep.subr.mxu0 %v183
    %357 = vmatpush1.msra.mxu0 %v182
    %358 = vmatprep.subr.mxu0 %v187
    %359 = vmatpush1.msra.mxu0 %v186
    %360 = vmatprep.subr.mxu0 %v191
    %361 = vmatpush1.msra.mxu0 %v190
    %362 = vmatprep.subr.mxu0 %v195
    %363 = vmatpush1.msra.mxu0 %v194
    %364 = vmatprep.mubr.f32.mxu0 %v226
    %365 = vmatmul.mubr.f32.gmra.mrb[0].mxu0 %v225
    %v366 = vpop.f32.mrb[0].mxu0
    %v367 = vadd.f32 %v209, %v366
    %v368 = vpop.f32.mrb[0].mxu0
    %v369 = vadd.f32 %v213, %v368
    %370 = vdwg.mxu0
    %v371 = vmul.f32 %v296, 0.2
    %v372 = vmul.f32 %v298, 0.2
    %v373 = vmul.f32 %v367, 0.2
    %v374 = vmul.f32 %v369, 0.2
    %v375 = vmax.f32 %v296, %v371
    %v376 = vmax.f32 %v298, %v372
    %v377 = vmax.f32 %v367, %v373
    %v378 = vmax.f32 %v369, %v374
    %v379 = vld [vmem:[#allocation8] sm:$0xff]
    %v380 = vld [vmem:[#allocation8 + $0x8] sm:$0xff]
    %v381 = vld [vmem:[#allocation8 + $0x10] sm:$0xff]
    %v382 = vld [vmem:[#allocation8 + $0x18] sm:$0xff]
    %v383 = vld [vmem:[#allocation8 + $0x20] sm:$0xff]
    %v384 = vld [vmem:[#allocation8 + $0x28] sm:$0xff]
    %v385 = vld [vmem:[#allocation8 + $0x30] sm:$0xff]
    %v386 = vld [vmem:[#allocation8 + $0x38] sm:$0xff]
    %v387 = vld [vmem:[#allocation8 + $0x40] sm:$0xff]
    %v388 = vld [vmem:[#allocation8 + $0x48] sm:$0xff]
    %v389 = vld [vmem:[#allocation8 + $0x50] sm:$0xff]
    %v390 = vld [vmem:[#allocation8 + $0x58] sm:$0xff]
    %v391 = vld [vmem:[#allocation8 + $0x60] sm:$0xff]
    %v392 = vld [vmem:[#allocation8 + $0x68] sm:$0xff]
    %v393 = vld [vmem:[#allocation8 + $0x70] sm:$0xff]
    %v394 = vld [vmem:[#allocation8 + $0x78] sm:$0xff]
    %v395 = vld [vmem:[#allocation8 + $0x80] sm:$0xff]
    %v396 = vld [vmem:[#allocation8 + $0x88] sm:$0xff]
    %v397 = vld [vmem:[#allocation8 + $0x90] sm:$0xff]
    %v398 = vld [vmem:[#allocation8 + $0x98] sm:$0xff]
    %v399 = vld [vmem:[#allocation8 + $0xa0] sm:$0xff]
    %v400 = vld [vmem:[#allocation8 + $0xa8] sm:$0xff]
    %v401 = vld [vmem:[#allocation8 + $0xb0] sm:$0xff]
    %v402 = vld [vmem:[#allocation8 + $0xb8] sm:$0xff]
    %v403 = vld [vmem:[#allocation8 + $0xc0] sm:$0xff]
    %v404 = vld [vmem:[#allocation8 + $0xc8] sm:$0xff]
    %v405 = vld [vmem:[#allocation8 + $0xd0] sm:$0xff]
    %v406 = vld [vmem:[#allocation8 + $0xd8] sm:$0xff]
    %v407 = vld [vmem:[#allocation8 + $0xe0] sm:$0xff]
    %v408 = vld [vmem:[#allocation8 + $0xe8] sm:$0xff]
    %v409 = vld [vmem:[#allocation8 + $0xf0] sm:$0xff]
    %v410 = vld [vmem:[#allocation8 + $0xf8] sm:$0xff]
    %v411 = vld [vmem:[#allocation8 + $0x100] sm:$0xff]
    %v412 = vld [vmem:[#allocation8 + $0x108] sm:$0xff]
    %v413 = vld [vmem:[#allocation8 + $0x110] sm:$0xff]
    %v414 = vld [vmem:[#allocation8 + $0x118] sm:$0xff]
    %v415 = vld [vmem:[#allocation8 + $0x120] sm:$0xff]
    %v416 = vld [vmem:[#allocation8 + $0x128] sm:$0xff]
    %v417 = vld [vmem:[#allocation8 + $0x130] sm:$0xff]
    %v418 = vld [vmem:[#allocation8 + $0x138] sm:$0xff]
    %v419 = vld [vmem:[#allocation8 + $0x140] sm:$0xff]
    %v420 = vld [vmem:[#allocation8 + $0x148] sm:$0xff]
    %v421 = vld [vmem:[#allocation8 + $0x150] sm:$0xff]
    %v422 = vld [vmem:[#allocation8 + $0x158] sm:$0xff]
    %v423 = vld [vmem:[#allocation8 + $0x160] sm:$0xff]
    %v424 = vld [vmem:[#allocation8 + $0x168] sm:$0xff]
    %v425 = vld [vmem:[#allocation8 + $0x170] sm:$0xff]
    %v426 = vld [vmem:[#allocation8 + $0x178] sm:$0xff]
    %v427 = vld [vmem:[#allocation8 + $0x180] sm:$0xff]
    %v428 = vld [vmem:[#allocation8 + $0x188] sm:$0xff]
    %v429 = vld [vmem:[#allocation8 + $0x190] sm:$0xff]
    %v430 = vld [vmem:[#allocation8 + $0x198] sm:$0xff]
    %v431 = vld [vmem:[#allocation8 + $0x1a0] sm:$0xff]
    %v432 = vld [vmem:[#allocation8 + $0x1a8] sm:$0xff]
    %v433 = vld [vmem:[#allocation8 + $0x1b0] sm:$0xff]
    %v434 = vld [vmem:[#allocation8 + $0x1b8] sm:$0xff]
    %v435 = vld [vmem:[#allocation8 + $0x1c0] sm:$0xff]
    %v436 = vld [vmem:[#allocation8 + $0x1c8] sm:$0xff]
    %v437 = vld [vmem:[#allocation8 + $0x1d0] sm:$0xff]
    %v438 = vld [vmem:[#allocation8 + $0x1d8] sm:$0xff]
    %v439 = vld [vmem:[#allocation8 + $0x1e0] sm:$0xff]
    %v440 = vld [vmem:[#allocation8 + $0x1e8] sm:$0xff]
    %v441 = vld [vmem:[#allocation8 + $0x1f0] sm:$0xff]
    %v442 = vld [vmem:[#allocation8 + $0x1f8] sm:$0xff]
    %v443 = vld [vmem:[#allocation8 + $0x200] sm:$0xff]
    %v444 = vld [vmem:[#allocation8 + $0x208] sm:$0xff]
    %v445 = vld [vmem:[#allocation8 + $0x210] sm:$0xff]
    %v446 = vld [vmem:[#allocation8 + $0x218] sm:$0xff]
    %v447 = vld [vmem:[#allocation8 + $0x220] sm:$0xff]
    %v448 = vld [vmem:[#allocation8 + $0x228] sm:$0xff]
    %v449 = vld [vmem:[#allocation8 + $0x230] sm:$0xff]
    %v450 = vld [vmem:[#allocation8 + $0x238] sm:$0xff]
    %v451 = vld [vmem:[#allocation8 + $0x240] sm:$0xff]
    %v452 = vld [vmem:[#allocation8 + $0x248] sm:$0xff]
    %v453 = vld [vmem:[#allocation8 + $0x250] sm:$0xff]
    %v454 = vld [vmem:[#allocation8 + $0x258] sm:$0xff]
    %v455 = vld [vmem:[#allocation8 + $0x260] sm:$0xff]
    %v456 = vld [vmem:[#allocation8 + $0x268] sm:$0xff]
    %v457 = vld [vmem:[#allocation8 + $0x270] sm:$0xff]
    %v458 = vld [vmem:[#allocation8 + $0x278] sm:$0xff]
    %v459 = vld [vmem:[#allocation8 + $0x280] sm:$0xff]
    %v460 = vld [vmem:[#allocation8 + $0x288] sm:$0xff]
    %v461 = vld [vmem:[#allocation8 + $0x290] sm:$0xff]
    %v462 = vld [vmem:[#allocation8 + $0x298] sm:$0xff]
    %v463 = vld [vmem:[#allocation8 + $0x2a0] sm:$0xff]
    %v464 = vld [vmem:[#allocation8 + $0x2a8] sm:$0xff]
    %v465 = vld [vmem:[#allocation8 + $0x2b0] sm:$0xff]
    %v466 = vld [vmem:[#allocation8 + $0x2b8] sm:$0xff]
    %v467 = vld [vmem:[#allocation8 + $0x2c0] sm:$0xff]
    %v468 = vld [vmem:[#allocation8 + $0x2c8] sm:$0xff]
    %v469 = vld [vmem:[#allocation8 + $0x2d0] sm:$0xff]
    %v470 = vld [vmem:[#allocation8 + $0x2d8] sm:$0xff]
    %v471 = vld [vmem:[#allocation8 + $0x2e0] sm:$0xff]
    %v472 = vld [vmem:[#allocation8 + $0x2e8] sm:$0xff]
    %v473 = vld [vmem:[#allocation8 + $0x2f0] sm:$0xff]
    %v474 = vld [vmem:[#allocation8 + $0x2f8] sm:$0xff]
    %v475 = vld [vmem:[#allocation8 + $0x300] sm:$0xff]
    %v476 = vld [vmem:[#allocation8 + $0x308] sm:$0xff]
    %v477 = vld [vmem:[#allocation8 + $0x310] sm:$0xff]
    %v478 = vld [vmem:[#allocation8 + $0x318] sm:$0xff]
    %v479 = vld [vmem:[#allocation8 + $0x320] sm:$0xff]
    %v480 = vld [vmem:[#allocation8 + $0x328] sm:$0xff]
    %v481 = vld [vmem:[#allocation8 + $0x330] sm:$0xff]
    %v482 = vld [vmem:[#allocation8 + $0x338] sm:$0xff]
    %v483 = vld [vmem:[#allocation8 + $0x340] sm:$0xff]
    %v484 = vld [vmem:[#allocation8 + $0x348] sm:$0xff]
    %v485 = vld [vmem:[#allocation8 + $0x350] sm:$0xff]
    %v486 = vld [vmem:[#allocation8 + $0x358] sm:$0xff]
    %v487 = vld [vmem:[#allocation8 + $0x360] sm:$0xff]
    %v488 = vld [vmem:[#allocation8 + $0x368] sm:$0xff]
    %v489 = vld [vmem:[#allocation8 + $0x370] sm:$0xff]
    %v490 = vld [vmem:[#allocation8 + $0x378] sm:$0xff]
    %v491 = vld [vmem:[#allocation8 + $0x380] sm:$0xff]
    %v492 = vld [vmem:[#allocation8 + $0x388] sm:$0xff]
    %v493 = vld [vmem:[#allocation8 + $0x390] sm:$0xff]
    %v494 = vld [vmem:[#allocation8 + $0x398] sm:$0xff]
    %v495 = vld [vmem:[#allocation8 + $0x3a0] sm:$0xff]
    %v496 = vld [vmem:[#allocation8 + $0x3a8] sm:$0xff]
    %v497 = vld [vmem:[#allocation8 + $0x3b0] sm:$0xff]
    %v498 = vld [vmem:[#allocation8 + $0x3b8] sm:$0xff]
    %v499 = vld [vmem:[#allocation8 + $0x3c0] sm:$0xff]
    %v500 = vld [vmem:[#allocation8 + $0x3c8] sm:$0xff]
    %v501 = vld [vmem:[#allocation8 + $0x3d0] sm:$0xff]
    %v502 = vld [vmem:[#allocation8 + $0x3d8] sm:$0xff]
    %v503 = vld [vmem:[#allocation8 + $0x3e0] sm:$0xff]
    %v504 = vld [vmem:[#allocation8 + $0x3e8] sm:$0xff]
    %v505 = vld [vmem:[#allocation8 + $0x3f0] sm:$0xff]
    %v506 = vld [vmem:[#allocation8 + $0x3f8] sm:$0xff]
    %v507 = vld [vmem:[%s4] sm:$0x3]
    %v509 = vlaneseq
    %v510 = vshrl.u32 %v509, 7
    %v511 = vsub.s32 0, %v510
    %v512 = vrot.slane %v507, %v511
    %v513 = vlaneseq
    %v514 = vshrl.u32 %v513, 7
    %v515 = vsub.s32 1, %v514
    %v516 = vrot.slane %v507, %v515
    %519 = vmatprep.subr.mxu0 %v380
    %520 = vmatpush1.msra.mxu0 %v379
    %521 = vmatprep.subr.mxu0 %v382
    %522 = vmatpush1.msra.mxu0 %v381
    %523 = vmatprep.subr.mxu0 %v384
    %524 = vmatpush1.msra.mxu0 %v383
    %525 = vmatprep.subr.mxu0 %v386
    %526 = vmatpush1.msra.mxu0 %v385
    %527 = vmatprep.subr.mxu0 %v388
    %528 = vmatpush1.msra.mxu0 %v387
    %529 = vmatprep.subr.mxu0 %v390
    %530 = vmatpush1.msra.mxu0 %v389
    %531 = vmatprep.subr.mxu0 %v392
    %532 = vmatpush1.msra.mxu0 %v391
    %533 = vmatprep.subr.mxu0 %v394
    %534 = vmatpush1.msra.mxu0 %v393
    %535 = vmatprep.subr.mxu0 %v396
    %536 = vmatpush1.msra.mxu0 %v395
    %537 = vmatprep.subr.mxu0 %v398
    %538 = vmatpush1.msra.mxu0 %v397
    %539 = vmatprep.subr.mxu0 %v400
    %540 = vmatpush1.msra.mxu0 %v399
    %541 = vmatprep.subr.mxu0 %v402
    %542 = vmatpush1.msra.mxu0 %v401
    %543 = vmatprep.subr.mxu0 %v404
    %544 = vmatpush1.msra.mxu0 %v403
    %545 = vmatprep.subr.mxu0 %v406
    %546 = vmatpush1.msra.mxu0 %v405
    %547 = vmatprep.subr.mxu0 %v408
    %548 = vmatpush1.msra.mxu0 %v407
    %549 = vmatprep.subr.mxu0 %v410
    %550 = vmatpush1.msra.mxu0 %v409
    %551 = vmatprep.subr.mxu0 %v412
    %552 = vmatpush1.msra.mxu0 %v411
    %553 = vmatprep.subr.mxu0 %v414
    %554 = vmatpush1.msra.mxu0 %v413
    %555 = vmatprep.subr.mxu0 %v416
    %556 = vmatpush1.msra.mxu0 %v415
    %557 = vmatprep.subr.mxu0 %v418
    %558 = vmatpush1.msra.mxu0 %v417
    %559 = vmatprep.subr.mxu0 %v420
    %560 = vmatpush1.msra.mxu0 %v419
    %561 = vmatprep.subr.mxu0 %v422
    %562 = vmatpush1.msra.mxu0 %v421
    %563 = vmatprep.subr.mxu0 %v424
    %564 = vmatpush1.msra.mxu0 %v423
    %565 = vmatprep.subr.mxu0 %v426
    %566 = vmatpush1.msra.mxu0 %v425
    %567 = vmatprep.subr.mxu0 %v428
    %568 = vmatpush1.msra.mxu0 %v427
    %569 = vmatprep.subr.mxu0 %v430
    %570 = vmatpush1.msra.mxu0 %v429
    %571 = vmatprep.subr.mxu0 %v432
    %572 = vmatpush1.msra.mxu0 %v431
    %573 = vmatprep.subr.mxu0 %v434
    %574 = vmatpush1.msra.mxu0 %v433
    %575 = vmatprep.subr.mxu0 %v436
    %576 = vmatpush1.msra.mxu0 %v435
    %577 = vmatprep.subr.mxu0 %v438
    %578 = vmatpush1.msra.mxu0 %v437
    %579 = vmatprep.subr.mxu0 %v440
    %580 = vmatpush1.msra.mxu0 %v439
    %581 = vmatprep.subr.mxu0 %v442
    %582 = vmatpush1.msra.mxu0 %v441
    %583 = vmatprep.mubr.f32.mxu0 %v376
    %584 = vmatmul.mubr.f32.gmra.mrb[0].mxu0 %v375
    %v585 = vpop.f32.mrb[0].mxu0
    %v586 = vadd.f32 %v512, %v585
    %v587 = vpop.f32.mrb[0].mxu0
    %v588 = vadd.f32 %v516, %v587
    %589 = vdwg.mxu0
    %590 = vmatprep.subr.mxu0 %v444
    %591 = vmatpush1.msra.mxu0 %v443
    %592 = vmatprep.subr.mxu0 %v446
    %593 = vmatpush1.msra.mxu0 %v445
    %594 = vmatprep.subr.mxu0 %v448
    %595 = vmatpush1.msra.mxu0 %v447
    %596 = vmatprep.subr.mxu0 %v450
    %597 = vmatpush1.msra.mxu0 %v449
    %598 = vmatprep.subr.mxu0 %v452
    %599 = vmatpush1.msra.mxu0 %v451
    %600 = vmatprep.subr.mxu0 %v454
    %601 = vmatpush1.msra.mxu0 %v453
    %602 = vmatprep.subr.mxu0 %v456
    %603 = vmatpush1.msra.mxu0 %v455
    %604 = vmatprep.subr.mxu0 %v458
    %605 = vmatpush1.msra.mxu0 %v457
    %606 = vmatprep.subr.mxu0 %v460
    %607 = vmatpush1.msra.mxu0 %v459
    %608 = vmatprep.subr.mxu0 %v462
    %609 = vmatpush1.msra.mxu0 %v461
    %610 = vmatprep.subr.mxu0 %v464
    %611 = vmatpush1.msra.mxu0 %v463
    %612 = vmatprep.subr.mxu0 %v466
    %613 = vmatpush1.msra.mxu0 %v465
    %614 = vmatprep.subr.mxu0 %v468
    %615 = vmatpush1.msra.mxu0 %v467
    %616 = vmatprep.subr.mxu0 %v470
    %617 = vmatpush1.msra.mxu0 %v469
    %618 = vmatprep.subr.mxu0 %v472
    %619 = vmatpush1.msra.mxu0 %v471
    %620 = vmatprep.subr.mxu0 %v474
    %621 = vmatpush1.msra.mxu0 %v473
    %622 = vmatprep.subr.mxu0 %v476
    %623 = vmatpush1.msra.mxu0 %v475
    %624 = vmatprep.subr.mxu0 %v478
    %625 = vmatpush1.msra.mxu0 %v477
    %626 = vmatprep.subr.mxu0 %v480
    %627 = vmatpush1.msra.mxu0 %v479
    %628 = vmatprep.subr.mxu0 %v482
    %629 = vmatpush1.msra.mxu0 %v481
    %630 = vmatprep.subr.mxu0 %v484
    %631 = vmatpush1.msra.mxu0 %v483
    %632 = vmatprep.subr.mxu0 %v486
    %633 = vmatpush1.msra.mxu0 %v485
    %634 = vmatprep.subr.mxu0 %v488
    %635 = vmatpush1.msra.mxu0 %v487
    %636 = vmatprep.subr.mxu0 %v490
    %637 = vmatpush1.msra.mxu0 %v489
    %638 = vmatprep.subr.mxu0 %v492
    %639 = vmatpush1.msra.mxu0 %v491
    %640 = vmatprep.subr.mxu0 %v494
    %641 = vmatpush1.msra.mxu0 %v493
    %642 = vmatprep.subr.mxu0 %v496
    %643 = vmatpush1.msra.mxu0 %v495
    %644 = vmatprep.subr.mxu0 %v498
    %645 = vmatpush1.msra.mxu0 %v497
    %646 = vmatprep.subr.mxu0 %v500
    %647 = vmatpush1.msra.mxu0 %v499
    %648 = vmatprep.subr.mxu0 %v502
    %649 = vmatpush1.msra.mxu0 %v501
    %650 = vmatprep.subr.mxu0 %v504
    %651 = vmatpush1.msra.mxu0 %v503
    %652 = vmatprep.subr.mxu0 %v506
    %653 = vmatpush1.msra.mxu0 %v505
    %654 = vmatprep.mubr.f32.mxu0 %v378
    %655 = vmatmul.mubr.f32.gmra.mrb[0].mxu0 %v377
    %v656 = vpop.f32.mrb[0].mxu0
    %v657 = vadd.f32 %v586, %v656
    %v658 = vpop.f32.mrb[0].mxu0
    %v659 = vadd.f32 %v588, %v658
    %660 = vdwg.mxu0
    %v661 = vmul.f32 %v657, 0.2
    %v662 = vmul.f32 %v659, 0.2
    %v663 = vmax.f32 %v657, %v661
    %v664 = vmax.f32 %v659, %v662
    %v665 = vld [vmem:[%s5] sm:$0x3]
    %v667 = vlaneseq
    %v668 = vshrl.u32 %v667, 7
    %v669 = vsub.s32 0, %v668
    %v670 = vrot.slane %v665, %v669
    %v671 = vlaneseq
    %v672 = vshrl.u32 %v671, 7
    %v673 = vsub.s32 1, %v672
    %v674 = vrot.slane %v665, %v673
    %v677 = vmul.f32 %v663, %v670
    %v678 = vmul.f32 %v664, %v674
    %vm679 = vcmask 1041408
    %v680 = vsel %vm679, %v677, 0.0
    %v681 = vsel %vm679, %v678, 0.0
    %v682 = vadd.f32 %v680, %v681
    %683 = vadd.xlane.f32.xlu0 %v682
    %v684 = vpop.xlane.xlu0 %683
    %s685 = sld [smem:[#allocation2]]
    %v686 = vstv %s685
    %v687 = vadd.f32 %v684, %v686
    %v688 = vsub.f32 0.0, %v687
    %v689 = vmul.f32 %v688, 1.442695
    %v690 = vpow.pop %v689
    %v691 = vadd.f32 %v690, 1.0
    %v692 = vrcp.pop %v691
    %v694 = vlaneseq
    %v695 = vand.u32 %v694, 127
    %v696 = vlaneseq
    %v697 = vshrl.u32 %v696, 7
    %v698 = vsub.s32 %v695, %v697
    %v699 = vrot.slane %v692, %v698
    %vm701 = vcmask 8192
    %702 = vst.msk [vmem:[#allocation9] sm:$0x1] %vm701, %v699
    // Predicated region
    $region42: #{tpu_custom_call.1} parent=1 // pred_check
      _
    $region43: #{tpu_custom_call.1} parent=1 // pred_check_branch
      %704 = sbr.rel (0) target = $region45
    $region44: #{tpu_custom_call.1} parent=1 // pred_region
      %s706 = ssub.s32 16, 16
      %707 = vsyncadd [#allocation5], %s706
      %s709 = sshll.u32 [#allocation9], 4
      %s710 = int_to_ptr.vmem [resolvable:$true] %s709
      %712 = dma.vmem_to_hbm [thread:$0]  %s710, 16, %s7, [#allocation5]
    $region45: #{tpu_custom_call.1} parent=1 // pred_fallthru
      _
    // Predicated region
    $region46: #{tpu_custom_call.1} parent=1 // pred_check
      _
    $region47: #{tpu_custom_call.1} parent=1 // pred_check_branch
      %714 = sbr.rel (0) target = $region49
    $region48: #{tpu_custom_call.1} parent=1 // pred_region
      %715 = dma.done [#allocation5], 16
    $region49: #{tpu_custom_call.1} parent=1 // pred_fallthru
      _
    %716 = vsyncpa [#allocation4], 1
    %717 = vsyncpa [#allocation7], 1
    %718 = vsyncpa [#allocation5], 1

// kernel: tpu_custom_call.1
$region0: #{tpu_custom_call.1}
  #allocation0 [shape = 'u32[]', space=smem, size = 0x4, offset = 0x4, fixed_abs, tag = 'smem constant byte address 0x4 - core index']
  #allocation1 [shape = 'u32[144,128]{1,0:T(1,128)}', space=vmem, size = 0x12000, scoped, tag = 'internal scratch']
  #allocation2 [shape = 'f32[1]{0:T(128)S(6)}', space=smem, size = 0x200, scoped, tag = 'scoped memory for tpu_custom_call.1']
  %s0 = inlined_call_operand.hbm [shape: f32[2,256], index: 0, kind: input, shape index: {}]
  %s1 = inlined_call_operand.hbm [shape: f32[256,512], index: 1, kind: input, shape index: {}]
  %s2 = inlined_call_operand.vmem [shape: f32[1,512], index: 2, kind: input, shape index: {}]
  %s3 = inlined_call_operand.hbm [shape: f32[512,256], index: 3, kind: input, shape index: {}]
  %s4 = inlined_call_operand.vmem [shape: f32[1,256], index: 4, kind: input, shape index: {}]
  %s5 = inlined_call_operand.vmem [shape: f32[1,256], index: 5, kind: input, shape index: {}]
  %s6 = inlined_call_operand.<no memory space> [shape: f32[1], index: 6, kind: input, shape index: {}]
  %s7 = inlined_call_operand.hbm [shape: f32[1,2], index: 7, kind: output, shape index: {}]
  %s8 = sld [smem:[#allocation0]]
  $region50: #{tpu_custom_call.1} parent=0
    _
  %s10 = ssub.s32 1, %s8
  %s11 = scalar_select 0, %s10, %s8
  %12 = sst [smem:[#allocation2]] %s6
  $region1: #{tpu_custom_call.1} parent=0
    #allocation3 [shape = 'u8[2048]{0}', space=vmem, size = 0x800, scoped, tag = 'input window, operand 0, single buffered']
    #allocation4 [shape = 's32[1]{0}', space=sflag, size = 0x4, scoped, tag = 'scoped memory for tpu_custom_call.1']
    #allocation5 [shape = 's32[1]{0}', space=sflag, size = 0x4, scoped, tag = 'scoped memory for tpu_custom_call.1']
    #allocation6 [shape = 'u8[524288]{0}', space=vmem, size = 0x80000, scoped, tag = 'input window, operand 1, single buffered']
    #allocation7 [shape = 's32[1]{0}', space=sflag, size = 0x4, scoped, tag = 'scoped memory for tpu_custom_call.1']
    #allocation8 [shape = 'u8[524288]{0}', space=vmem, size = 0x80000, scoped, tag = 'input window, operand 3, single buffered']
    #allocation9 [shape = 'u8[512]{0}', space=vmem, size = 0x400, scoped, tag = 'output window, operand 0, single buffered']
    %13 = vsyncpa [#allocation4], 0
    %14 = vsyncpa [#allocation7], 0
    %15 = vsyncpa [#allocation5], 0
    // Predicated region
    $region2: #{tpu_custom_call.1} parent=1 // pred_check
      _
    $region3: #{tpu_custom_call.1} parent=1 // pred_check_branch
      %17 = sbr.rel (0) target = $region5
    $region4: #{tpu_custom_call.1} parent=1 // pred_region
      %s19 = ssub.s32 64, 64
      %20 = vsyncadd [#allocation4], %s19
      %s22 = sshll.u32 [#allocation3], 4
      %s23 = int_to_ptr.vmem [resolvable:$true] %s22
      %25 = dma.hbm_to_vmem [thread:$0]  %s0, 64, %s23, [#allocation4]
    $region5: #{tpu_custom_call.1} parent=1 // pred_fallthru
      _
    // Predicated region
    $region6: #{tpu_custom_call.1} parent=1 // pred_check
      _
    $region7: #{tpu_custom_call.1} parent=1 // pred_check_branch
      %27 = sbr.rel (0) target = $region9
    $region8: #{tpu_custom_call.1} parent=1 // pred_region
      %s29 = ssub.s32 16384, 16384
      %30 = vsyncadd [#allocation7], %s29
      %s31 = sshll.u32 [#allocation6], 4
      %s32 = int_to_ptr.vmem [resolvable:$true] %s31
      %37 = dma.hbm_to_vmem [thread:$0]  %s1, 16384, %s32, [#allocation7], 512, 512, 32
    $region9: #{tpu_custom_call.1} parent=1 // pred_fallthru
      _
    // Predicated region
    $region10: #{tpu_custom_call.1} parent=1 // pred_check
      _
    $region11: #{tpu_custom_call.1} parent=1 // pred_check_branch
      %39 = sbr.rel (0) target = $region13
    $region12: #{tpu_custom_call.1} parent=1 // pred_region
      _
    $region13: #{tpu_custom_call.1} parent=1 // pred_fallthru
      _
    // Predicated region
    $region14: #{tpu_custom_call.1} parent=1 // pred_check
      _
    $region15: #{tpu_custom_call.1} parent=1 // pred_check_branch
      %41 = sbr.rel (0) target = $region17
    $region16: #{tpu_custom_call.1} parent=1 // pred_region
      %s43 = ssub.s32 16384, 16384
      %44 = vsyncadd [#allocation7], %s43
      %s45 = sshll.u32 [#allocation8], 4
      %s46 = int_to_ptr.vmem [resolvable:$true] %s45
      %51 = dma.hbm_to_vmem [thread:$0]  %s3, 16384, %s46, [#allocation7], 256, 256, 16
    $region17: #{tpu_custom_call.1} parent=1 // pred_fallthru
      _
    // Predicated region
    $region18: #{tpu_custom_call.1} parent=1 // pred_check
      _
    $region19: #{tpu_custom_call.1} parent=1 // pred_check_branch
      %53 = sbr.rel (0) target = $region21
    $region20: #{tpu_custom_call.1} parent=1 // pred_region
      _
    $region21: #{tpu_custom_call.1} parent=1 // pred_fallthru
      _
    // Predicated region
    $region22: #{tpu_custom_call.1} parent=1 // pred_check
      _
    $region23: #{tpu_custom_call.1} parent=1 // pred_check_branch
      %55 = sbr.rel (0) target = $region25
    $region24: #{tpu_custom_call.1} parent=1 // pred_region
      _
    $region25: #{tpu_custom_call.1} parent=1 // pred_fallthru
      _
    // Predicated region
    $region26: #{tpu_custom_call.1} parent=1 // pred_check
      _
    $region27: #{tpu_custom_call.1} parent=1 // pred_check_branch
      %57 = sbr.rel (0) target = $region29
    $region28: #{tpu_custom_call.1} parent=1 // pred_region
      _
    $region29: #{tpu_custom_call.1} parent=1 // pred_fallthru
      _
    // Predicated region
    $region30: #{tpu_custom_call.1} parent=1 // pred_check
      _
    $region31: #{tpu_custom_call.1} parent=1 // pred_check_branch
      %59 = sbr.rel (0) target = $region33
    $region32: #{tpu_custom_call.1} parent=1 // pred_region
      %60 = dma.done [#allocation4], 64
    $region33: #{tpu_custom_call.1} parent=1 // pred_fallthru
      _
    // Predicated region
    $region34: #{tpu_custom_call.1} parent=1 // pred_check
      _
    $region35: #{tpu_custom_call.1} parent=1 // pred_check_branch
      %62 = sbr.rel (0) target = $region37
    $region36: #{tpu_custom_call.1} parent=1 // pred_region
      %63 = dma.done [#allocation7], 16384
    $region37: #{tpu_custom_call.1} parent=1 // pred_fallthru
      _
    // Predicated region
    $region38: #{tpu_custom_call.1} parent=1 // pred_check
      _
    $region39: #{tpu_custom_call.1} parent=1 // pred_check_branch
      %65 = sbr.rel (0) target = $region41
    $region40: #{tpu_custom_call.1} parent=1 // pred_region
      %66 = dma.done [#allocation7], 16384
    $region41: #{tpu_custom_call.1} parent=1 // pred_fallthru
      _
    %v67 = vld [vmem:[#allocation3] sm:$0xf]
    %v68 = vld [vmem:[#allocation6] sm:$0xff]
    %v69 = vld [vmem:[#allocation6 + $0x8] sm:$0xff]
    %v70 = vld [vmem:[#allocation6 + $0x10] sm:$0xff]
    %v71 = vld [vmem:[#allocation6 + $0x18] sm:$0xff]
    %v72 = vld [vmem:[#allocation6 + $0x20] sm:$0xff]
    %v73 = vld [vmem:[#allocation6 + $0x28] sm:$0xff]
    %v74 = vld [vmem:[#allocation6 + $0x30] sm:$0xff]
    %v75 = vld [vmem:[#allocation6 + $0x38] sm:$0xff]
    %v76 = vld [vmem:[#allocation6 + $0x40] sm:$0xff]
    %v77 = vld [vmem:[#allocation6 + $0x48] sm:$0xff]
    %v78 = vld [vmem:[#allocation6 + $0x50] sm:$0xff]
    %v79 = vld [vmem:[#allocation6 + $0x58] sm:$0xff]
    %v80 = vld [vmem:[#allocation6 + $0x60] sm:$0xff]
    %v81 = vld [vmem:[#allocation6 + $0x68] sm:$0xff]
    %v82 = vld [vmem:[#allocation6 + $0x70] sm:$0xff]
    %v83 = vld [vmem:[#allocation6 + $0x78] sm:$0xff]
    %v84 = vld [vmem:[#allocation6 + $0x80] sm:$0xff]
    %v85 = vld [vmem:[#allocation6 + $0x88] sm:$0xff]
    %v86 = vld [vmem:[#allocation6 + $0x90] sm:$0xff]
    %v87 = vld [vmem:[#allocation6 + $0x98] sm:$0xff]
    %v88 = vld [vmem:[#allocation6 + $0xa0] sm:$0xff]
    %v89 = vld [vmem:[#allocation6 + $0xa8] sm:$0xff]
    %v90 = vld [vmem:[#allocation6 + $0xb0] sm:$0xff]
    %v91 = vld [vmem:[#allocation6 + $0xb8] sm:$0xff]
    %v92 = vld [vmem:[#allocation6 + $0xc0] sm:$0xff]
    %v93 = vld [vmem:[#allocation6 + $0xc8] sm:$0xff]
    %v94 = vld [vmem:[#allocation6 + $0xd0] sm:$0xff]
    %v95 = vld [vmem:[#allocation6 + $0xd8] sm:$0xff]
    %v96 = vld [vmem:[#allocation6 + $0xe0] sm:$0xff]
    %v97 = vld [vmem:[#allocation6 + $0xe8] sm:$0xff]
    %v98 = vld [vmem:[#allocation6 + $0xf0] sm:$0xff]
    %v99 = vld [vmem:[#allocation6 + $0xf8] sm:$0xff]
    %v100 = vld [vmem:[#allocation6 + $0x100] sm:$0xff]
    %v101 = vld [vmem:[#allocation6 + $0x108] sm:$0xff]
    %v102 = vld [vmem:[#allocation6 + $0x110] sm:$0xff]
    %v103 = vld [vmem:[#allocation6 + $0x118] sm:$0xff]
    %v104 = vld [vmem:[#allocation6 + $0x120] sm:$0xff]
    %v105 = vld [vmem:[#allocation6 + $0x128] sm:$0xff]
    %v106 = vld [vmem:[#allocation6 + $0x130] sm:$0xff]
    %v107 = vld [vmem:[#allocation6 + $0x138] sm:$0xff]
    %v108 = vld [vmem:[#allocation6 + $0x140] sm:$0xff]
    %v109 = vld [vmem:[#allocation6 + $0x148] sm:$0xff]
    %v110 = vld [vmem:[#allocation6 + $0x150] sm:$0xff]
    %v111 = vld [vmem:[#allocation6 + $0x158] sm:$0xff]
    %v112 = vld [vmem:[#allocation6 + $0x160] sm:$0xff]
    %v113 = vld [vmem:[#allocation6 + $0x168] sm:$0xff]
    %v114 = vld [vmem:[#allocation6 + $0x170] sm:$0xff]
    %v115 = vld [vmem:[#allocation6 + $0x178] sm:$0xff]
    %v116 = vld [vmem:[#allocation6 + $0x180] sm:$0xff]
    %v117 = vld [vmem:[#allocation6 + $0x188] sm:$0xff]
    %v118 = vld [vmem:[#allocation6 + $0x190] sm:$0xff]
    %v119 = vld [vmem:[#allocation6 + $0x198] sm:$0xff]
    %v120 = vld [vmem:[#allocation6 + $0x1a0] sm:$0xff]
    %v121 = vld [vmem:[#allocation6 + $0x1a8] sm:$0xff]
    %v122 = vld [vmem:[#allocation6 + $0x1b0] sm:$0xff]
    %v123 = vld [vmem:[#allocation6 + $0x1b8] sm:$0xff]
    %v124 = vld [vmem:[#allocation6 + $0x1c0] sm:$0xff]
    %v125 = vld [vmem:[#allocation6 + $0x1c8] sm:$0xff]
    %v126 = vld [vmem:[#allocation6 + $0x1d0] sm:$0xff]
    %v127 = vld [vmem:[#allocation6 + $0x1d8] sm:$0xff]
    %v128 = vld [vmem:[#allocation6 + $0x1e0] sm:$0xff]
    %v129 = vld [vmem:[#allocation6 + $0x1e8] sm:$0xff]
    %v130 = vld [vmem:[#allocation6 + $0x1f0] sm:$0xff]
    %v131 = vld [vmem:[#allocation6 + $0x1f8] sm:$0xff]
    %v132 = vld [vmem:[#allocation6 + $0x200] sm:$0xff]
    %v133 = vld [vmem:[#allocation6 + $0x208] sm:$0xff]
    %v134 = vld [vmem:[#allocation6 + $0x210] sm:$0xff]
    %v135 = vld [vmem:[#allocation6 + $0x218] sm:$0xff]
    %v136 = vld [vmem:[#allocation6 + $0x220] sm:$0xff]
    %v137 = vld [vmem:[#allocation6 + $0x228] sm:$0xff]
    %v138 = vld [vmem:[#allocation6 + $0x230] sm:$0xff]
    %v139 = vld [vmem:[#allocation6 + $0x238] sm:$0xff]
    %v140 = vld [vmem:[#allocation6 + $0x240] sm:$0xff]
    %v141 = vld [vmem:[#allocation6 + $0x248] sm:$0xff]
    %v142 = vld [vmem:[#allocation6 + $0x250] sm:$0xff]
    %v143 = vld [vmem:[#allocation6 + $0x258] sm:$0xff]
    %v144 = vld [vmem:[#allocation6 + $0x260] sm:$0xff]
    %v145 = vld [vmem:[#allocation6 + $0x268] sm:$0xff]
    %v146 = vld [vmem:[#allocation6 + $0x270] sm:$0xff]
    %v147 = vld [vmem:[#allocation6 + $0x278] sm:$0xff]
    %v148 = vld [vmem:[#allocation6 + $0x280] sm:$0xff]
    %v149 = vld [vmem:[#allocation6 + $0x288] sm:$0xff]
    %v150 = vld [vmem:[#allocation6 + $0x290] sm:$0xff]
    %v151 = vld [vmem:[#allocation6 + $0x298] sm:$0xff]
    %v152 = vld [vmem:[#allocation6 + $0x2a0] sm:$0xff]
    %v153 = vld [vmem:[#allocation6 + $0x2a8] sm:$0xff]
    %v154 = vld [vmem:[#allocation6 + $0x2b0] sm:$0xff]
    %v155 = vld [vmem:[#allocation6 + $0x2b8] sm:$0xff]
    %v156 = vld [vmem:[#allocation6 + $0x2c0] sm:$0xff]
    %v157 = vld [vmem:[#allocation6 + $0x2c8] sm:$0xff]
    %v158 = vld [vmem:[#allocation6 + $0x2d0] sm:$0xff]
    %v159 = vld [vmem:[#allocation6 + $0x2d8] sm:$0xff]
    %v160 = vld [vmem:[#allocation6 + $0x2e0] sm:$0xff]
    %v161 = vld [vmem:[#allocation6 + $0x2e8] sm:$0xff]
    %v162 = vld [vmem:[#allocation6 + $0x2f0] sm:$0xff]
    %v163 = vld [vmem:[#allocation6 + $0x2f8] sm:$0xff]
    %v164 = vld [vmem:[#allocation6 + $0x300] sm:$0xff]
    %v165 = vld [vmem:[#allocation6 + $0x308] sm:$0xff]
    %v166 = vld [vmem:[#allocation6 + $0x310] sm:$0xff]
    %v167 = vld [vmem:[#allocation6 + $0x318] sm:$0xff]
    %v168 = vld [vmem:[#allocation6 + $0x320] sm:$0xff]
    %v169 = vld [vmem:[#allocation6 + $0x328] sm:$0xff]
    %v170 = vld [vmem:[#allocation6 + $0x330] sm:$0xff]
    %v171 = vld [vmem:[#allocation6 + $0x338] sm:$0xff]
    %v172 = vld [vmem:[#allocation6 + $0x340] sm:$0xff]
    %v173 = vld [vmem:[#allocation6 + $0x348] sm:$0xff]
    %v174 = vld [vmem:[#allocation6 + $0x350] sm:$0xff]
    %v175 = vld [vmem:[#allocation6 + $0x358] sm:$0xff]
    %v176 = vld [vmem:[#allocation6 + $0x360] sm:$0xff]
    %v177 = vld [vmem:[#allocation6 + $0x368] sm:$0xff]
    %v178 = vld [vmem:[#allocation6 + $0x370] sm:$0xff]
    %v179 = vld [vmem:[#allocation6 + $0x378] sm:$0xff]
    %v180 = vld [vmem:[#allocation6 + $0x380] sm:$0xff]
    %v181 = vld [vmem:[#allocation6 + $0x388] sm:$0xff]
    %v182 = vld [vmem:[#allocation6 + $0x390] sm:$0xff]
    %v183 = vld [vmem:[#allocation6 + $0x398] sm:$0xff]
    %v184 = vld [vmem:[#allocation6 + $0x3a0] sm:$0xff]
    %v185 = vld [vmem:[#allocation6 + $0x3a8] sm:$0xff]
    %v186 = vld [vmem:[#allocation6 + $0x3b0] sm:$0xff]
    %v187 = vld [vmem:[#allocation6 + $0x3b8] sm:$0xff]
    %v188 = vld [vmem:[#allocation6 + $0x3c0] sm:$0xff]
    %v189 = vld [vmem:[#allocation6 + $0x3c8] sm:$0xff]
    %v190 = vld [vmem:[#allocation6 + $0x3d0] sm:$0xff]
    %v191 = vld [vmem:[#allocation6 + $0x3d8] sm:$0xff]
    %v192 = vld [vmem:[#allocation6 + $0x3e0] sm:$0xff]
    %v193 = vld [vmem:[#allocation6 + $0x3e8] sm:$0xff]
    %v194 = vld [vmem:[#allocation6 + $0x3f0] sm:$0xff]
    %v195 = vld [vmem:[#allocation6 + $0x3f8] sm:$0xff]
    %v196 = vld [vmem:[%s2] sm:$0xf]
    %v198 = vlaneseq
    %v199 = vshrl.u32 %v198, 7
    %v200 = vsub.s32 0, %v199
    %v201 = vrot.slane %v196, %v200
    %v202 = vlaneseq
    %v203 = vshrl.u32 %v202, 7
    %v204 = vsub.s32 1, %v203
    %v205 = vrot.slane %v196, %v204
    %v206 = vlaneseq
    %v207 = vshrl.u32 %v206, 7
    %v208 = vsub.s32 2, %v207
    %v209 = vrot.slane %v196, %v208
    %v210 = vlaneseq
    %v211 = vshrl.u32 %v210, 7
    %v212 = vsub.s32 3, %v211
    %v213 = vrot.slane %v196, %v212
    %v220 = vunpack.c.l.s4 1983009808
    %v221 = vunpack.c.0.s8 %v220
    %v222 = vlaneseq
    %v223 = vshrl.u32 %v222, 7
    %v224 = vsub.s32 %v221, %v223
    %v225 = vrot.slane %v67, %v224
    %v226 = vcombine.high %v225, %v225
    %229 = vmatprep.subr.mxu0 %v69
    %230 = vmatpush1.msra.mxu0 %v68
    %231 = vmatprep.subr.mxu0 %v73
    %232 = vmatpush1.msra.mxu0 %v72
    %233 = vmatprep.subr.mxu0 %v77
    %234 = vmatpush1.msra.mxu0 %v76
    %235 = vmatprep.subr.mxu0 %v81
    %236 = vmatpush1.msra.mxu0 %v80
    %237 = vmatprep.subr.mxu0 %v85
    %238 = vmatpush1.msra.mxu0 %v84
    %239 = vmatprep.subr.mxu0 %v89
    %240 = vmatpush1.msra.mxu0 %v88
    %241 = vmatprep.subr.mxu0 %v93
    %242 = vmatpush1.msra.mxu0 %v92
    %243 = vmatprep.subr.mxu0 %v97
    %244 = vmatpush1.msra.mxu0 %v96
    %245 = vmatprep.subr.mxu0 %v101
    %246 = vmatpush1.msra.mxu0 %v100
    %247 = vmatprep.subr.mxu0 %v105
    %248 = vmatpush1.msra.mxu0 %v104
    %249 = vmatprep.subr.mxu0 %v109
    %250 = vmatpush1.msra.mxu0 %v108
    %251 = vmatprep.subr.mxu0 %v113
    %252 = vmatpush1.msra.mxu0 %v112
    %253 = vmatprep.subr.mxu0 %v117
    %254 = vmatpush1.msra.mxu0 %v116
    %255 = vmatprep.subr.mxu0 %v121
    %256 = vmatpush1.msra.mxu0 %v120
    %257 = vmatprep.subr.mxu0 %v125
    %258 = vmatpush1.msra.mxu0 %v124
    %259 = vmatprep.subr.mxu0 %v129
    %260 = vmatpush1.msra.mxu0 %v128
    %261 = vmatprep.subr.mxu0 %v133
    %262 = vmatpush1.msra.mxu0 %v132
    %263 = vmatprep.subr.mxu0 %v137
    %264 = vmatpush1.msra.mxu0 %v136
    %265 = vmatprep.subr.mxu0 %v141
    %266 = vmatpush1.msra.mxu0 %v140
    %267 = vmatprep.subr.mxu0 %v145
    %268 = vmatpush1.msra.mxu0 %v144
    %269 = vmatprep.subr.mxu0 %v149
    %270 = vmatpush1.msra.mxu0 %v148
    %271 = vmatprep.subr.mxu0 %v153
    %272 = vmatpush1.msra.mxu0 %v152
    %273 = vmatprep.subr.mxu0 %v157
    %274 = vmatpush1.msra.mxu0 %v156
    %275 = vmatprep.subr.mxu0 %v161
    %276 = vmatpush1.msra.mxu0 %v160
    %277 = vmatprep.subr.mxu0 %v165
    %278 = vmatpush1.msra.mxu0 %v164
    %279 = vmatprep.subr.mxu0 %v169
    %280 = vmatpush1.msra.mxu0 %v168
    %281 = vmatprep.subr.mxu0 %v173
    %282 = vmatpush1.msra.mxu0 %v172
    %283 = vmatprep.subr.mxu0 %v177
    %284 = vmatpush1.msra.mxu0 %v176
    %285 = vmatprep.subr.mxu0 %v181
    %286 = vmatpush1.msra.mxu0 %v180
    %287 = vmatprep.subr.mxu0 %v185
    %288 = vmatpush1.msra.mxu0 %v184
    %289 = vmatprep.subr.mxu0 %v189
    %290 = vmatpush1.msra.mxu0 %v188
    %291 = vmatprep.subr.mxu0 %v193
    %292 = vmatpush1.msra.mxu0 %v192
    %293 = vmatprep.mubr.f32.mxu0 %v226
    %294 = vmatmul.mubr.f32.gmra.mrb[0].mxu0 %v225
    %v295 = vpop.f32.mrb[0].mxu0
    %v296 = vadd.f32 %v201, %v295
    %v297 = vpop.f32.mrb[0].mxu0
    %v298 = vadd.f32 %v205, %v297
    %299 = vdwg.mxu0
    %300 = vmatprep.subr.mxu0 %v71
    %301 = vmatpush1.msra.mxu0 %v70
    %302 = vmatprep.subr.mxu0 %v75
    %303 = vmatpush1.msra.mxu0 %v74
    %304 = vmatprep.subr.mxu0 %v79
    %305 = vmatpush1.msra.mxu0 %v78
    %306 = vmatprep.subr.mxu0 %v83
    %307 = vmatpush1.msra.mxu0 %v82
    %308 = vmatprep.subr.mxu0 %v87
    %309 = vmatpush1.msra.mxu0 %v86
    %310 = vmatprep.subr.mxu0 %v91
    %311 = vmatpush1.msra.mxu0 %v90
    %312 = vmatprep.subr.mxu0 %v95
    %313 = vmatpush1.msra.mxu0 %v94
    %314 = vmatprep.subr.mxu0 %v99
    %315 = vmatpush1.msra.mxu0 %v98
    %316 = vmatprep.subr.mxu0 %v103
    %317 = vmatpush1.msra.mxu0 %v102
    %318 = vmatprep.subr.mxu0 %v107
    %319 = vmatpush1.msra.mxu0 %v106
    %320 = vmatprep.subr.mxu0 %v111
    %321 = vmatpush1.msra.mxu0 %v110
    %322 = vmatprep.subr.mxu0 %v115
    %323 = vmatpush1.msra.mxu0 %v114
    %324 = vmatprep.subr.mxu0 %v119
    %325 = vmatpush1.msra.mxu0 %v118
    %326 = vmatprep.subr.mxu0 %v123
    %327 = vmatpush1.msra.mxu0 %v122
    %328 = vmatprep.subr.mxu0 %v127
    %329 = vmatpush1.msra.mxu0 %v126
    %330 = vmatprep.subr.mxu0 %v131
    %331 = vmatpush1.msra.mxu0 %v130
    %332 = vmatprep.subr.mxu0 %v135
    %333 = vmatpush1.msra.mxu0 %v134
    %334 = vmatprep.subr.mxu0 %v139
    %335 = vmatpush1.msra.mxu0 %v138
    %336 = vmatprep.subr.mxu0 %v143
    %337 = vmatpush1.msra.mxu0 %v142
    %338 = vmatprep.subr.mxu0 %v147
    %339 = vmatpush1.msra.mxu0 %v146
    %340 = vmatprep.subr.mxu0 %v151
    %341 = vmatpush1.msra.mxu0 %v150
    %342 = vmatprep.subr.mxu0 %v155
    %343 = vmatpush1.msra.mxu0 %v154
    %344 = vmatprep.subr.mxu0 %v159
    %345 = vmatpush1.msra.mxu0 %v158
    %346 = vmatprep.subr.mxu0 %v163
    %347 = vmatpush1.msra.mxu0 %v162
    %348 = vmatprep.subr.mxu0 %v167
    %349 = vmatpush1.msra.mxu0 %v166
    %350 = vmatprep.subr.mxu0 %v171
    %351 = vmatpush1.msra.mxu0 %v170
    %352 = vmatprep.subr.mxu0 %v175
    %353 = vmatpush1.msra.mxu0 %v174
    %354 = vmatprep.subr.mxu0 %v179
    %355 = vmatpush1.msra.mxu0 %v178
    %356 = vmatprep.subr.mxu0 %v183
    %357 = vmatpush1.msra.mxu0 %v182
    %358 = vmatprep.subr.mxu0 %v187
    %359 = vmatpush1.msra.mxu0 %v186
    %360 = vmatprep.subr.mxu0 %v191
    %361 = vmatpush1.msra.mxu0 %v190
    %362 = vmatprep.subr.mxu0 %v195
    %363 = vmatpush1.msra.mxu0 %v194
    %364 = vmatprep.mubr.f32.mxu0 %v226
    %365 = vmatmul.mubr.f32.gmra.mrb[0].mxu0 %v225
    %v366 = vpop.f32.mrb[0].mxu0
    %v367 = vadd.f32 %v209, %v366
    %v368 = vpop.f32.mrb[0].mxu0
    %v369 = vadd.f32 %v213, %v368
    %370 = vdwg.mxu0
    %v371 = vmul.f32 %v296, 0.2
    %v372 = vmul.f32 %v298, 0.2
    %v373 = vmul.f32 %v367, 0.2
    %v374 = vmul.f32 %v369, 0.2
    %v375 = vmax.f32 %v296, %v371
    %v376 = vmax.f32 %v298, %v372
    %v377 = vmax.f32 %v367, %v373
    %v378 = vmax.f32 %v369, %v374
    %v379 = vld [vmem:[#allocation8] sm:$0xff]
    %v380 = vld [vmem:[#allocation8 + $0x8] sm:$0xff]
    %v381 = vld [vmem:[#allocation8 + $0x10] sm:$0xff]
    %v382 = vld [vmem:[#allocation8 + $0x18] sm:$0xff]
    %v383 = vld [vmem:[#allocation8 + $0x20] sm:$0xff]
    %v384 = vld [vmem:[#allocation8 + $0x28] sm:$0xff]
    %v385 = vld [vmem:[#allocation8 + $0x30] sm:$0xff]
    %v386 = vld [vmem:[#allocation8 + $0x38] sm:$0xff]
    %v387 = vld [vmem:[#allocation8 + $0x40] sm:$0xff]
    %v388 = vld [vmem:[#allocation8 + $0x48] sm:$0xff]
    %v389 = vld [vmem:[#allocation8 + $0x50] sm:$0xff]
    %v390 = vld [vmem:[#allocation8 + $0x58] sm:$0xff]
    %v391 = vld [vmem:[#allocation8 + $0x60] sm:$0xff]
    %v392 = vld [vmem:[#allocation8 + $0x68] sm:$0xff]
    %v393 = vld [vmem:[#allocation8 + $0x70] sm:$0xff]
    %v394 = vld [vmem:[#allocation8 + $0x78] sm:$0xff]
    %v395 = vld [vmem:[#allocation8 + $0x80] sm:$0xff]
    %v396 = vld [vmem:[#allocation8 + $0x88] sm:$0xff]
    %v397 = vld [vmem:[#allocation8 + $0x90] sm:$0xff]
    %v398 = vld [vmem:[#allocation8 + $0x98] sm:$0xff]
    %v399 = vld [vmem:[#allocation8 + $0xa0] sm:$0xff]
    %v400 = vld [vmem:[#allocation8 + $0xa8] sm:$0xff]
    %v401 = vld [vmem:[#allocation8 + $0xb0] sm:$0xff]
    %v402 = vld [vmem:[#allocation8 + $0xb8] sm:$0xff]
    %v403 = vld [vmem:[#allocation8 + $0xc0] sm:$0xff]
    %v404 = vld [vmem:[#allocation8 + $0xc8] sm:$0xff]
    %v405 = vld [vmem:[#allocation8 + $0xd0] sm:$0xff]
    %v406 = vld [vmem:[#allocation8 + $0xd8] sm:$0xff]
    %v407 = vld [vmem:[#allocation8 + $0xe0] sm:$0xff]
    %v408 = vld [vmem:[#allocation8 + $0xe8] sm:$0xff]
    %v409 = vld [vmem:[#allocation8 + $0xf0] sm:$0xff]
    %v410 = vld [vmem:[#allocation8 + $0xf8] sm:$0xff]
    %v411 = vld [vmem:[#allocation8 + $0x100] sm:$0xff]
    %v412 = vld [vmem:[#allocation8 + $0x108] sm:$0xff]
    %v413 = vld [vmem:[#allocation8 + $0x110] sm:$0xff]
    %v414 = vld [vmem:[#allocation8 + $0x118] sm:$0xff]
    %v415 = vld [vmem:[#allocation8 + $0x120] sm:$0xff]
    %v416 = vld [vmem:[#allocation8 + $0x128] sm:$0xff]
    %v417 = vld [vmem:[#allocation8 + $0x130] sm:$0xff]
    %v418 = vld [vmem:[#allocation8 + $0x138] sm:$0xff]
    %v419 = vld [vmem:[#allocation8 + $0x140] sm:$0xff]
    %v420 = vld [vmem:[#allocation8 + $0x148] sm:$0xff]
    %v421 = vld [vmem:[#allocation8 + $0x150] sm:$0xff]
    %v422 = vld [vmem:[#allocation8 + $0x158] sm:$0xff]
    %v423 = vld [vmem:[#allocation8 + $0x160] sm:$0xff]
    %v424 = vld [vmem:[#allocation8 + $0x168] sm:$0xff]
    %v425 = vld [vmem:[#allocation8 + $0x170] sm:$0xff]
    %v426 = vld [vmem:[#allocation8 + $0x178] sm:$0xff]
    %v427 = vld [vmem:[#allocation8 + $0x180] sm:$0xff]
    %v428 = vld [vmem:[#allocation8 + $0x188] sm:$0xff]
    %v429 = vld [vmem:[#allocation8 + $0x190] sm:$0xff]
    %v430 = vld [vmem:[#allocation8 + $0x198] sm:$0xff]
    %v431 = vld [vmem:[#allocation8 + $0x1a0] sm:$0xff]
    %v432 = vld [vmem:[#allocation8 + $0x1a8] sm:$0xff]
    %v433 = vld [vmem:[#allocation8 + $0x1b0] sm:$0xff]
    %v434 = vld [vmem:[#allocation8 + $0x1b8] sm:$0xff]
    %v435 = vld [vmem:[#allocation8 + $0x1c0] sm:$0xff]
    %v436 = vld [vmem:[#allocation8 + $0x1c8] sm:$0xff]
    %v437 = vld [vmem:[#allocation8 + $0x1d0] sm:$0xff]
    %v438 = vld [vmem:[#allocation8 + $0x1d8] sm:$0xff]
    %v439 = vld [vmem:[#allocation8 + $0x1e0] sm:$0xff]
    %v440 = vld [vmem:[#allocation8 + $0x1e8] sm:$0xff]
    %v441 = vld [vmem:[#allocation8 + $0x1f0] sm:$0xff]
    %v442 = vld [vmem:[#allocation8 + $0x1f8] sm:$0xff]
    %v443 = vld [vmem:[#allocation8 + $0x200] sm:$0xff]
    %v444 = vld [vmem:[#allocation8 + $0x208] sm:$0xff]
    %v445 = vld [vmem:[#allocation8 + $0x210] sm:$0xff]
    %v446 = vld [vmem:[#allocation8 + $0x218] sm:$0xff]
    %v447 = vld [vmem:[#allocation8 + $0x220] sm:$0xff]
    %v448 = vld [vmem:[#allocation8 + $0x228] sm:$0xff]
    %v449 = vld [vmem:[#allocation8 + $0x230] sm:$0xff]
    %v450 = vld [vmem:[#allocation8 + $0x238] sm:$0xff]
    %v451 = vld [vmem:[#allocation8 + $0x240] sm:$0xff]
    %v452 = vld [vmem:[#allocation8 + $0x248] sm:$0xff]
    %v453 = vld [vmem:[#allocation8 + $0x250] sm:$0xff]
    %v454 = vld [vmem:[#allocation8 + $0x258] sm:$0xff]
    %v455 = vld [vmem:[#allocation8 + $0x260] sm:$0xff]
    %v456 = vld [vmem:[#allocation8 + $0x268] sm:$0xff]
    %v457 = vld [vmem:[#allocation8 + $0x270] sm:$0xff]
    %v458 = vld [vmem:[#allocation8 + $0x278] sm:$0xff]
    %v459 = vld [vmem:[#allocation8 + $0x280] sm:$0xff]
    %v460 = vld [vmem:[#allocation8 + $0x288] sm:$0xff]
    %v461 = vld [vmem:[#allocation8 + $0x290] sm:$0xff]
    %v462 = vld [vmem:[#allocation8 + $0x298] sm:$0xff]
    %v463 = vld [vmem:[#allocation8 + $0x2a0] sm:$0xff]
    %v464 = vld [vmem:[#allocation8 + $0x2a8] sm:$0xff]
    %v465 = vld [vmem:[#allocation8 + $0x2b0] sm:$0xff]
    %v466 = vld [vmem:[#allocation8 + $0x2b8] sm:$0xff]
    %v467 = vld [vmem:[#allocation8 + $0x2c0] sm:$0xff]
    %v468 = vld [vmem:[#allocation8 + $0x2c8] sm:$0xff]
    %v469 = vld [vmem:[#allocation8 + $0x2d0] sm:$0xff]
    %v470 = vld [vmem:[#allocation8 + $0x2d8] sm:$0xff]
    %v471 = vld [vmem:[#allocation8 + $0x2e0] sm:$0xff]
    %v472 = vld [vmem:[#allocation8 + $0x2e8] sm:$0xff]
    %v473 = vld [vmem:[#allocation8 + $0x2f0] sm:$0xff]
    %v474 = vld [vmem:[#allocation8 + $0x2f8] sm:$0xff]
    %v475 = vld [vmem:[#allocation8 + $0x300] sm:$0xff]
    %v476 = vld [vmem:[#allocation8 + $0x308] sm:$0xff]
    %v477 = vld [vmem:[#allocation8 + $0x310] sm:$0xff]
    %v478 = vld [vmem:[#allocation8 + $0x318] sm:$0xff]
    %v479 = vld [vmem:[#allocation8 + $0x320] sm:$0xff]
    %v480 = vld [vmem:[#allocation8 + $0x328] sm:$0xff]
    %v481 = vld [vmem:[#allocation8 + $0x330] sm:$0xff]
    %v482 = vld [vmem:[#allocation8 + $0x338] sm:$0xff]
    %v483 = vld [vmem:[#allocation8 + $0x340] sm:$0xff]
    %v484 = vld [vmem:[#allocation8 + $0x348] sm:$0xff]
    %v485 = vld [vmem:[#allocation8 + $0x350] sm:$0xff]
    %v486 = vld [vmem:[#allocation8 + $0x358] sm:$0xff]
    %v487 = vld [vmem:[#allocation8 + $0x360] sm:$0xff]
    %v488 = vld [vmem:[#allocation8 + $0x368] sm:$0xff]
    %v489 = vld [vmem:[#allocation8 + $0x370] sm:$0xff]
    %v490 = vld [vmem:[#allocation8 + $0x378] sm:$0xff]
    %v491 = vld [vmem:[#allocation8 + $0x380] sm:$0xff]
    %v492 = vld [vmem:[#allocation8 + $0x388] sm:$0xff]
    %v493 = vld [vmem:[#allocation8 + $0x390] sm:$0xff]
    %v494 = vld [vmem:[#allocation8 + $0x398] sm:$0xff]
    %v495 = vld [vmem:[#allocation8 + $0x3a0] sm:$0xff]
    %v496 = vld [vmem:[#allocation8 + $0x3a8] sm:$0xff]
    %v497 = vld [vmem:[#allocation8 + $0x3b0] sm:$0xff]
    %v498 = vld [vmem:[#allocation8 + $0x3b8] sm:$0xff]
    %v499 = vld [vmem:[#allocation8 + $0x3c0] sm:$0xff]
    %v500 = vld [vmem:[#allocation8 + $0x3c8] sm:$0xff]
    %v501 = vld [vmem:[#allocation8 + $0x3d0] sm:$0xff]
    %v502 = vld [vmem:[#allocation8 + $0x3d8] sm:$0xff]
    %v503 = vld [vmem:[#allocation8 + $0x3e0] sm:$0xff]
    %v504 = vld [vmem:[#allocation8 + $0x3e8] sm:$0xff]
    %v505 = vld [vmem:[#allocation8 + $0x3f0] sm:$0xff]
    %v506 = vld [vmem:[#allocation8 + $0x3f8] sm:$0xff]
    %v507 = vld [vmem:[%s4] sm:$0x3]
    %v509 = vlaneseq
    %v510 = vshrl.u32 %v509, 7
    %v511 = vsub.s32 0, %v510
    %v512 = vrot.slane %v507, %v511
    %v513 = vlaneseq
    %v514 = vshrl.u32 %v513, 7
    %v515 = vsub.s32 1, %v514
    %v516 = vrot.slane %v507, %v515
    %519 = vmatprep.subr.mxu0 %v380
    %520 = vmatpush1.msra.mxu0 %v379
    %521 = vmatprep.subr.mxu0 %v382
    %522 = vmatpush1.msra.mxu0 %v381
    %523 = vmatprep.subr.mxu0 %v384
    %524 = vmatpush1.msra.mxu0 %v383
    %525 = vmatprep.subr.mxu0 %v386
    %526 = vmatpush1.msra.mxu0 %v385
    %527 = vmatprep.subr.mxu0 %v388
    %528 = vmatpush1.msra.mxu0 %v387
    %529 = vmatprep.subr.mxu0 %v390
    %530 = vmatpush1.msra.mxu0 %v389
    %531 = vmatprep.subr.mxu0 %v392
    %532 = vmatpush1.msra.mxu0 %v391
    %533 = vmatprep.subr.mxu0 %v394
    %534 = vmatpush1.msra.mxu0 %v393
    %535 = vmatprep.subr.mxu0 %v396
    %536 = vmatpush1.msra.mxu0 %v395
    %537 = vmatprep.subr.mxu0 %v398
    %538 = vmatpush1.msra.mxu0 %v397
    %539 = vmatprep.subr.mxu0 %v400
    %540 = vmatpush1.msra.mxu0 %v399
    %541 = vmatprep.subr.mxu0 %v402
    %542 = vmatpush1.msra.mxu0 %v401
    %543 = vmatprep.subr.mxu0 %v404
    %544 = vmatpush1.msra.mxu0 %v403
    %545 = vmatprep.subr.mxu0 %v406
    %546 = vmatpush1.msra.mxu0 %v405
    %547 = vmatprep.subr.mxu0 %v408
    %548 = vmatpush1.msra.mxu0 %v407
    %549 = vmatprep.subr.mxu0 %v410
    %550 = vmatpush1.msra.mxu0 %v409
    %551 = vmatprep.subr.mxu0 %v412
    %552 = vmatpush1.msra.mxu0 %v411
    %553 = vmatprep.subr.mxu0 %v414
    %554 = vmatpush1.msra.mxu0 %v413
    %555 = vmatprep.subr.mxu0 %v416
    %556 = vmatpush1.msra.mxu0 %v415
    %557 = vmatprep.subr.mxu0 %v418
    %558 = vmatpush1.msra.mxu0 %v417
    %559 = vmatprep.subr.mxu0 %v420
    %560 = vmatpush1.msra.mxu0 %v419
    %561 = vmatprep.subr.mxu0 %v422
    %562 = vmatpush1.msra.mxu0 %v421
    %563 = vmatprep.subr.mxu0 %v424
    %564 = vmatpush1.msra.mxu0 %v423
    %565 = vmatprep.subr.mxu0 %v426
    %566 = vmatpush1.msra.mxu0 %v425
    %567 = vmatprep.subr.mxu0 %v428
    %568 = vmatpush1.msra.mxu0 %v427
    %569 = vmatprep.subr.mxu0 %v430
    %570 = vmatpush1.msra.mxu0 %v429
    %571 = vmatprep.subr.mxu0 %v432
    %572 = vmatpush1.msra.mxu0 %v431
    %573 = vmatprep.subr.mxu0 %v434
    %574 = vmatpush1.msra.mxu0 %v433
    %575 = vmatprep.subr.mxu0 %v436
    %576 = vmatpush1.msra.mxu0 %v435
    %577 = vmatprep.subr.mxu0 %v438
    %578 = vmatpush1.msra.mxu0 %v437
    %579 = vmatprep.subr.mxu0 %v440
    %580 = vmatpush1.msra.mxu0 %v439
    %581 = vmatprep.subr.mxu0 %v442
    %582 = vmatpush1.msra.mxu0 %v441
    %583 = vmatprep.mubr.f32.mxu0 %v376
    %584 = vmatmul.mubr.f32.gmra.mrb[0].mxu0 %v375
    %v585 = vpop.f32.mrb[0].mxu0
    %v586 = vadd.f32 %v512, %v585
    %v587 = vpop.f32.mrb[0].mxu0
    %v588 = vadd.f32 %v516, %v587
    %589 = vdwg.mxu0
    %590 = vmatprep.subr.mxu0 %v444
    %591 = vmatpush1.msra.mxu0 %v443
    %592 = vmatprep.subr.mxu0 %v446
    %593 = vmatpush1.msra.mxu0 %v445
    %594 = vmatprep.subr.mxu0 %v448
    %595 = vmatpush1.msra.mxu0 %v447
    %596 = vmatprep.subr.mxu0 %v450
    %597 = vmatpush1.msra.mxu0 %v449
    %598 = vmatprep.subr.mxu0 %v452
    %599 = vmatpush1.msra.mxu0 %v451
    %600 = vmatprep.subr.mxu0 %v454
    %601 = vmatpush1.msra.mxu0 %v453
    %602 = vmatprep.subr.mxu0 %v456
    %603 = vmatpush1.msra.mxu0 %v455
    %604 = vmatprep.subr.mxu0 %v458
    %605 = vmatpush1.msra.mxu0 %v457
    %606 = vmatprep.subr.mxu0 %v460
    %607 = vmatpush1.msra.mxu0 %v459
    %608 = vmatprep.subr.mxu0 %v462
    %609 = vmatpush1.msra.mxu0 %v461
    %610 = vmatprep.subr.mxu0 %v464
    %611 = vmatpush1.msra.mxu0 %v463
    %612 = vmatprep.subr.mxu0 %v466
    %613 = vmatpush1.msra.mxu0 %v465
    %614 = vmatprep.subr.mxu0 %v468
    %615 = vmatpush1.msra.mxu0 %v467
    %616 = vmatprep.subr.mxu0 %v470
    %617 = vmatpush1.msra.mxu0 %v469
    %618 = vmatprep.subr.mxu0 %v472
    %619 = vmatpush1.msra.mxu0 %v471
    %620 = vmatprep.subr.mxu0 %v474
    %621 = vmatpush1.msra.mxu0 %v473
    %622 = vmatprep.subr.mxu0 %v476
    %623 = vmatpush1.msra.mxu0 %v475
    %624 = vmatprep.subr.mxu0 %v478
    %625 = vmatpush1.msra.mxu0 %v477
    %626 = vmatprep.subr.mxu0 %v480
    %627 = vmatpush1.msra.mxu0 %v479
    %628 = vmatprep.subr.mxu0 %v482
    %629 = vmatpush1.msra.mxu0 %v481
    %630 = vmatprep.subr.mxu0 %v484
    %631 = vmatpush1.msra.mxu0 %v483
    %632 = vmatprep.subr.mxu0 %v486
    %633 = vmatpush1.msra.mxu0 %v485
    %634 = vmatprep.subr.mxu0 %v488
    %635 = vmatpush1.msra.mxu0 %v487
    %636 = vmatprep.subr.mxu0 %v490
    %637 = vmatpush1.msra.mxu0 %v489
    %638 = vmatprep.subr.mxu0 %v492
    %639 = vmatpush1.msra.mxu0 %v491
    %640 = vmatprep.subr.mxu0 %v494
    %641 = vmatpush1.msra.mxu0 %v493
    %642 = vmatprep.subr.mxu0 %v496
    %643 = vmatpush1.msra.mxu0 %v495
    %644 = vmatprep.subr.mxu0 %v498
    %645 = vmatpush1.msra.mxu0 %v497
    %646 = vmatprep.subr.mxu0 %v500
    %647 = vmatpush1.msra.mxu0 %v499
    %648 = vmatprep.subr.mxu0 %v502
    %649 = vmatpush1.msra.mxu0 %v501
    %650 = vmatprep.subr.mxu0 %v504
    %651 = vmatpush1.msra.mxu0 %v503
    %652 = vmatprep.subr.mxu0 %v506
    %653 = vmatpush1.msra.mxu0 %v505
    %654 = vmatprep.mubr.f32.mxu0 %v378
    %655 = vmatmul.mubr.f32.gmra.mrb[0].mxu0 %v377
    %v656 = vpop.f32.mrb[0].mxu0
    %v657 = vadd.f32 %v586, %v656
    %v658 = vpop.f32.mrb[0].mxu0
    %v659 = vadd.f32 %v588, %v658
    %660 = vdwg.mxu0
    %v661 = vmul.f32 %v657, 0.2
    %v662 = vmul.f32 %v659, 0.2
    %v663 = vmax.f32 %v657, %v661
    %v664 = vmax.f32 %v659, %v662
    %v665 = vld [vmem:[%s5] sm:$0x3]
    %v667 = vlaneseq
    %v668 = vshrl.u32 %v667, 7
    %v669 = vsub.s32 0, %v668
    %v670 = vrot.slane %v665, %v669
    %v671 = vlaneseq
    %v672 = vshrl.u32 %v671, 7
    %v673 = vsub.s32 1, %v672
    %v674 = vrot.slane %v665, %v673
    %v677 = vmul.f32 %v663, %v670
    %v678 = vmul.f32 %v664, %v674
    %vm679 = vcmask 1041408
    %v680 = vsel %vm679, %v677, 0.0
    %v681 = vsel %vm679, %v678, 0.0
    %v682 = vadd.f32 %v680, %v681
    %683 = vadd.xlane.f32.xlu0 %v682
    %v684 = vpop.xlane.xlu0 %683
    %s685 = sld [smem:[#allocation2]]
    %v686 = vstv %s685
    %v687 = vadd.f32 %v684, %v686
    %v688 = vsub.f32 0.0, %v687
    %v689 = vmul.f32 %v688, 1.442695
    %v690 = vpow.pop %v689
    %v691 = vadd.f32 %v690, 1.0
    %v692 = vrcp.pop %v691
    %v694 = vlaneseq
    %v695 = vand.u32 %v694, 127
    %v696 = vlaneseq
    %v697 = vshrl.u32 %v696, 7
    %v698 = vsub.s32 %v695, %v697
    %v699 = vrot.slane %v692, %v698
    %vm701 = vcmask 8192
    %702 = vst.msk [vmem:[#allocation9] sm:$0x1] %vm701, %v699
    // Predicated region
    $region42: #{tpu_custom_call.1} parent=1 // pred_check
      _
    $region43: #{tpu_custom_call.1} parent=1 // pred_check_branch
      %704 = sbr.rel (0) target = $region45
    $region44: #{tpu_custom_call.1} parent=1 // pred_region
      %s706 = ssub.s32 16, 16
      %707 = vsyncadd [#allocation5], %s706
      %s709 = sshll.u32 [#allocation9], 4
      %s710 = int_to_ptr.vmem [resolvable:$true] %s709
      %712 = dma.vmem_to_hbm [thread:$0]  %s710, 16, %s7, [#allocation5]
    $region45: #{tpu_custom_call.1} parent=1 // pred_fallthru
      _
    // Predicated region
    $region46: #{tpu_custom_call.1} parent=1 // pred_check
      _
    $region47: #{tpu_custom_call.1} parent=1 // pred_check_branch
      %714 = sbr.rel (0) target = $region49
    $region48: #{tpu_custom_call.1} parent=1 // pred_region
      %715 = dma.done [#allocation5], 16
    $region49: #{tpu_custom_call.1} parent=1 // pred_fallthru
      _
    %716 = vsyncpa [#allocation4], 1
    %717 = vsyncpa [#allocation7], 1
    %718 = vsyncpa [#allocation5], 1

</llo_original>
